<compile_context>
chip_gen: v5e
topology: v5e:2x2
jax: 0.10.0
libtpu: 0.0.40
codegen_flags: <defaults>
</compile_context>

<pallas_src>
import functools

import jax
import jax.numpy as jnp
from jax import lax
from jax.experimental import pallas as pl
from jax.experimental.pallas import tpu as pltpu


def _vmem_capacity_bytes():
    try:
        return int(pltpu.get_tpu_info().vmem_capacity_bytes)
    except Exception:
        return 64 * 1024 * 1024  # conservative default (v7x physical per-TC VMEM)


def _pick_tile(B, D, itemsize, budget):
    """Largest lane-aligned tile t (t | B, t % 128 == 0) whose double-buffered
    img/txt blocks fit `budget`; prefer t <= B/2 so the 'parallel' row axis can
    span both TensorCores on v7x.  Falls back to the full extent for small B."""
    cands = [d for d in range(128, B + 1, 128) if B % d == 0]
    if not cands:
        return B  # small batch: single full-extent tile (always legal)

    def cost(t):  # 2 inputs x 2 pipeline buffers + lane-padded (t,1) scratch/out
        return 4 * t * D * itemsize + 8 * t * 128 * 4

    fits = [t for t in cands if cost(t) <= budget]
    if not fits:
        return cands[0]  # smallest aligned tile; vmem limit is raised by caller
    two_core = [t for t in fits if t <= B // 2]
    return max(two_core) if two_core else max(fits)


# ---------------------------------------------------------------------------
# Fused hard-negative miner + triplet margin loss.
#   grid = (B/t rows "parallel", B/t cols "arbitrary")
#   score[i, j] = ||txt_j||^2 - 2 img_i . txt_j     (argmin == argmin of L2)
#   running min carried across the column axis; per-row loss emitted at the
#   last column step; d_ap computed on the diagonal tile.
# ---------------------------------------------------------------------------
def _fused_miner_loss_kernel(img_ref, txt_ref, txtsq_ref, txtsum_ref,
                             loss_ref,
                             minsc_ref, wsum_ref, imgsq_ref, imgsum_ref,
                             dap_ref, *, margin, eps, dim):
    i = pl.program_id(0)  # anchor row block    ("parallel")
    j = pl.program_id(1)  # candidate col block ("arbitrary")

    img = img_ref[...]    # (t, D) kept in the input dtype for the MXU
    txt = txt_ref[...]    # (t, D)

    # Per-row-block stats + running-min init, once per row block.
    @pl.when(j == 0)
    def _():
        img_f = img.astype(jnp.float32)
        imgsq_ref[...] = jnp.sum(img_f * img_f, axis=-1, keepdims=True)
        imgsum_ref[...] = jnp.sum(img_f, axis=-1, keepdims=True)
        minsc_ref[...] = jnp.full(minsc_ref.shape, jnp.inf, dtype=jnp.float32)
        wsum_ref[...] = jnp.zeros_like(wsum_ref)

    # MXU matmul in the input dtype (bf16 inputs avoid the ~3x f32 emulation
    # passes); f32 accumulation.  ||txt||^2 arrives pre-reduced and lane-major,
    # so no per-tile reduce or (tn,1)->(1,tn) transpose is needed.
    cross = lax.dot_general(img, txt, (((1,), (1,)), ((), ())),
                            preferred_element_type=jnp.float32)   # (t, t)
    score = txtsq_ref[...] - 2.0 * cross                          # (t, t)

    def _update(masked_score):
        tile_min = jnp.min(masked_score, axis=-1, keepdims=True)  # (t, 1)
        # sum(txt) of the winning column (only feeds the tiny eps term of the
        # torch-style distance); reuses the same mask, one extra lane-min.
        tile_wsum = jnp.min(
            jnp.where(masked_score <= tile_min, txtsum_ref[...], jnp.inf),
            axis=-1, keepdims=True)                               # (t, 1)
        better = tile_min < minsc_ref[...]
        minsc_ref[...] = jnp.where(better, tile_min, minsc_ref[...])
        wsum_ref[...] = jnp.where(better, tile_wsum, wsum_ref[...])

    # Diagonal tile only: positive distance (txt_i is already in VMEM) and the
    # j == i exclusion.  Off-diagonal tiles skip the iota / mask work entirely.
    @pl.when(i == j)
    def _():
        img_f = img.astype(jnp.float32)
        txt_f = txt.astype(jnp.float32)
        dpos = img_f - txt_f + eps                                # torch eps
        dap_ref[...] = jnp.sqrt(jnp.sum(dpos * dpos, axis=-1, keepdims=True))
        row_l = lax.broadcasted_iota(jnp.int32, score.shape, 0)
        col_l = lax.broadcasted_iota(jnp.int32, score.shape, 1)
        _update(jnp.where(row_l == col_l, jnp.inf, score))

    @pl.when(i != j)
    def _():
        _update(score)

    # Finalize: reconstruct ||a - n + eps||^2 exactly and emit per-row hinge.
    @pl.when(j == pl.num_programs(1) - 1)
    def _():
        dan_sq = (imgsq_ref[...] + minsc_ref[...]
                  + 2.0 * eps * (imgsum_ref[...] - wsum_ref[...])
                  + dim * eps * eps)
        d_an = jnp.sqrt(jnp.maximum(dan_sq, 0.0))
        loss_ref[...] = jnp.maximum(dap_ref[...] - d_an + margin, 0.0)


# ---------------------------------------------------------------------------
# Tiny batch-mean reduction (O(B) bytes).
# ---------------------------------------------------------------------------
def _mean_kernel(x_ref, o_ref, acc_ref, *, total):
    s = pl.program_id(0)

    @pl.when(s == 0)
    def _():
        acc_ref[...] = jnp.zeros_like(acc_ref)

    acc_ref[...] += jnp.sum(x_ref[...], axis=0, keepdims=True)

    @pl.when(s == pl.num_programs(0) - 1)
    def _():
        o_ref[...] = acc_ref[...] * (1.0 / total)


# ---------------------------------------------------------------------------
# Module-equivalent forward
# ---------------------------------------------------------------------------
def triplet_margin_loss_with_miner(img_embeddings, text_embeddings,
                                   margin=0.2, mode="image2text", eps=1e-6):
    # .squeeze() matches the torch module (drops all singleton dims).
    img = jnp.squeeze(img_embeddings)            # (B, D)
    txt = jnp.squeeze(text_embeddings)           # (B, D)
    B, D = img.shape

    # Lane-major per-column stats: one fused XLA pass over txt in the wrapper
    # instead of a recompute (and a transpose) on every miner tile.
    txt_f = txt.astype(jnp.float32)
    txt_sq = jnp.sum(txt_f * txt_f, axis=1)[None, :]    # (1, B)
    txt_sum = jnp.sum(txt_f, axis=1)[None, :]           # (1, B)

    cap = _vmem_capacity_bytes()
    isz = img.dtype.itemsize
    t = _pick_tile(B, D, isz, budget=int(cap * 0.4))

    need = (4 * t * D * isz          # img + txt blocks, double buffered
            + 4 * 2 * 8 * t * 4      # txt_sq / txt_sum blocks (sublane padded)
            + 2 * t * 128 * 4        # output block (lane padded)
            + 5 * t * 128 * 4)       # (t, 1) f32 scratches (lane padded)
    vmem_limit = int(min(cap * 0.9, max(2 * need + (4 << 20), 32 << 20)))

    kern = functools.partial(_fused_miner_loss_kernel, margin=float(margin),
                             eps=float(eps), dim=D)
    losses = pl.pallas_call(
        kern,
        out_shape=jax.ShapeDtypeStruct((B, 1), jnp.float32),
        grid=(B // t, B // t),
        in_specs=[
            pl.BlockSpec((t, D), lambda i, j: (i, 0)),   # img  (anchor rows)
            pl.BlockSpec((t, D), lambda i, j: (j, 0)),   # txt  (candidate cols)
            pl.BlockSpec((1, t), lambda i, j: (0, j)),   # ||txt||^2, lane-major
            pl.BlockSpec((1, t), lambda i, j: (0, j)),   # sum(txt),  lane-major
        ],
        out_specs=pl.BlockSpec((t, 1), lambda i, j: (i, 0)),
        scratch_shapes=[pltpu.VMEM((t, 1), jnp.float32) for _ in range(5)],
        compiler_params=pltpu.CompilerParams(
            dimension_semantics=("parallel", "arbitrary"),
            vmem_limit_bytes=vmem_limit),
    )(img, txt, txt_sq, txt_sum)

    mean_kern = functools.partial(_mean_kernel, total=float(B))
    out = pl.pallas_call(
        mean_kern,
        out_shape=jax.ShapeDtypeStruct((1, 1), jnp.float32),
        grid=(B // t,),
        in_specs=[pl.BlockSpec((t, 1), lambda s: (s, 0))],
        out_specs=pl.BlockSpec((1, 1), lambda s: (0, 0)),
        scratch_shapes=[pltpu.VMEM((1, 1), jnp.float32)],
        compiler_params=pltpu.CompilerParams(
            dimension_semantics=("arbitrary",)),
    )(losses)
    return out[0, 0]


# ---------------------------------------------------------------------------
# Pure-JAX reference (same deterministic miner) for a correctness spot-check.
# ---------------------------------------------------------------------------
def _reference_loss(img_e, txt_e, margin, eps=1e-6):
    img = jnp.squeeze(img_e).astype(jnp.float32)
    txt = jnp.squeeze(txt_e).astype(jnp.float32)
    B = img.shape[0]
    cross = jnp.matmul(img, txt.T, precision=lax.Precision.HIGHEST)
    d2 = (jnp.sum(img * img, axis=1, keepdims=True)
          + jnp.sum(txt * txt, axis=1)[None, :] - 2.0 * cross)
    d2 = jnp.where(jnp.eye(B, dtype=bool), jnp.inf, d2)
    neg = txt[jnp.argmin(d2, axis=1)]
    d_ap = jnp.sqrt(jnp.sum((img - txt + eps) ** 2, axis=1))
    d_an = jnp.sqrt(jnp.sum((img - neg + eps) ** 2, axis=1))
    return jnp.mean(jnp.maximum(d_ap - d_an + margin, 0.0))


if __name__ == "__main__":
    # Small, but large enough for a 2x2 grid of lane-aligned (128-wide) tiles
    # so the running-min, diagonal-tile and megacore paths are all exercised.
    B, D = 256, 64
    key = jax.random.PRNGKey(0)
    k_img, k_txt = jax.random.split(key)
    # embeddings carry a singleton dim (exercises .squeeze())
    img_embeddings = jax.random.normal(k_img, (B, 1, D), dtype=jnp.float32)
    text_embeddings = jax.random.normal(k_txt, (B, 1, D), dtype=jnp.float32)

    loss = triplet_margin_loss_with_miner(img_embeddings, text_embeddings,
                                          margin=0.2, mode="image2text")
    loss = jax.block_until_ready(loss)

    ref = _reference_loss(img_embeddings, text_embeddings, margin=0.2)
    assert loss.shape == () and bool(jnp.isfinite(loss)), loss
    assert jnp.allclose(loss, ref, rtol=1e-3, atol=1e-3), (loss, ref)
    print("KERNEL_OK")
</pallas_src>

<mosaic_0001>
module attributes {stable_mosaic.version = 11 : i64} {
  func.func @_fused_miner_loss_kernel(%arg0: i32, %arg1: i32, %arg2: memref<128x64xf32, #tpu.memory_space<vmem>>, %arg3: memref<128x64xf32, #tpu.memory_space<vmem>>, %arg4: memref<1x128xf32, #tpu.memory_space<vmem>>, %arg5: memref<1x128xf32, #tpu.memory_space<vmem>>, %arg6: memref<128x1xf32, #tpu.memory_space<vmem>>, %arg7: memref<128x1xf32, #tpu.memory_space<vmem>>, %arg8: memref<128x1xf32, #tpu.memory_space<vmem>>, %arg9: memref<128x1xf32, #tpu.memory_space<vmem>>, %arg10: memref<128x1xf32, #tpu.memory_space<vmem>>, %arg11: memref<128x1xf32, #tpu.memory_space<vmem>>) attributes {dimension_semantics = [#tpu.dimension_semantics<parallel>, #tpu.dimension_semantics<arbitrary>], iteration_bounds = array<i64: 2, 2>, scalar_prefetch = 0 : i64, scratch_operands = 5 : i64, tpu.core_type = #tpu.core_type<tc>, window_params = [{transform_indices = @transform_0, window_bounds = array<i64: 128, 64>}, {transform_indices = @transform_1, window_bounds = array<i64: 128, 64>}, {transform_indices = @transform_2, window_bounds = array<i64: 1, 128>}, {transform_indices = @transform_3, window_bounds = array<i64: 1, 128>}, {transform_indices = @transform_4, window_bounds = array<i64: 128, 1>}]} {
    %c0 = arith.constant 0 : index
    %c0_0 = arith.constant 0 : index
    %0 = vector.load %arg2[%c0, %c0_0] : memref<128x64xf32, #tpu.memory_space<vmem>>, vector<128x64xf32>
    %c0_1 = arith.constant 0 : index
    %c0_2 = arith.constant 0 : index
    %1 = vector.load %arg3[%c0_1, %c0_2] : memref<128x64xf32, #tpu.memory_space<vmem>>, vector<128x64xf32>
    %c0_i32 = arith.constant 0 : i32
    %2 = arith.cmpi eq, %arg1, %c0_i32 : i32
    %3 = arith.extui %2 : i1 to i32
    %c0_i32_3 = arith.constant 0 : i32
    %4 = arith.cmpi ne, %3, %c0_i32_3 : i32
    scf.if %4 {
      %20 = arith.mulf %0, %0 : vector<128x64xf32>
      %cst_10 = arith.constant dense<0.000000e+00> : vector<128xf32>
      %21 = vector.multi_reduction <add>, %20, %cst_10 [1] : vector<128x64xf32> to vector<128xf32>
      %22 = vector.shape_cast %21 : vector<128xf32> to vector<128x1xf32>
      %c0_11 = arith.constant 0 : index
      %c0_12 = arith.constant 0 : index
      %23 = vector.load %arg9[%c0_11, %c0_12] : memref<128x1xf32, #tpu.memory_space<vmem>>, vector<128x1xf32>
      tpu.vector_store %arg9[%c0_11, %c0_12], %22 {strides = array<i32>} : memref<128x1xf32, #tpu.memory_space<vmem>>, vector<128x1xf32>,
      %cst_13 = arith.constant dense<0.000000e+00> : vector<128xf32>
      %24 = vector.multi_reduction <add>, %0, %cst_13 [1] : vector<128x64xf32> to vector<128xf32>
      %25 = vector.shape_cast %24 : vector<128xf32> to vector<128x1xf32>
      %c0_14 = arith.constant 0 : index
      %c0_15 = arith.constant 0 : index
      %26 = vector.load %arg10[%c0_14, %c0_15] : memref<128x1xf32, #tpu.memory_space<vmem>>, vector<128x1xf32>
      tpu.vector_store %arg10[%c0_14, %c0_15], %25 {strides = array<i32>} : memref<128x1xf32, #tpu.memory_space<vmem>>, vector<128x1xf32>,
      %cst_16 = arith.constant 0x7F800000 : f32
      %27 = vector.broadcast %cst_16 : f32 to vector<128x1xf32>
      %c0_17 = arith.constant 0 : index
      %c0_18 = arith.constant 0 : index
      %28 = vector.load %arg7[%c0_17, %c0_18] : memref<128x1xf32, #tpu.memory_space<vmem>>, vector<128x1xf32>
      tpu.vector_store %arg7[%c0_17, %c0_18], %27 {strides = array<i32>} : memref<128x1xf32, #tpu.memory_space<vmem>>, vector<128x1xf32>,
      %cst_19 = arith.constant 0.000000e+00 : f32
      %29 = vector.broadcast %cst_19 : f32 to vector<128x1xf32>
      %c0_20 = arith.constant 0 : index
      %c0_21 = arith.constant 0 : index
      %30 = vector.load %arg8[%c0_20, %c0_21] : memref<128x1xf32, #tpu.memory_space<vmem>>, vector<128x1xf32>
      tpu.vector_store %arg8[%c0_20, %c0_21], %29 {strides = array<i32>} : memref<128x1xf32, #tpu.memory_space<vmem>>, vector<128x1xf32>,
    } else {
    }
    %cst = arith.constant dense<0.000000e+00> : vector<128x128xf32>
    %5 = tpu.matmul %0, %1, %cst {dimension_numbers = #tpu.dot_dimension_numbers<[1], [1], [0], [0], [0, 0, 1, 0], [], []>} : vector<128x64xf32>, vector<128x64xf32>, vector<128x128xf32> -> vector<128x128xf32>
    %c0_4 = arith.constant 0 : index
    %c0_5 = arith.constant 0 : index
    %6 = vector.load %arg4[%c0_4, %c0_5] : memref<1x128xf32, #tpu.memory_space<vmem>>, vector<1x128xf32>
    %cst_6 = arith.constant 2.000000e+00 : f32
    %7 = vector.broadcast %cst_6 : f32 to vector<128x128xf32>
    %8 = arith.mulf %7, %5 : vector<128x128xf32>
    %9 = vector.broadcast %6 : vector<1x128xf32> to vector<128x128xf32>
    %10 = arith.subf %9, %8 : vector<128x128xf32>
    %11 = arith.cmpi eq, %arg0, %arg1 : i32
    %12 = arith.extui %11 : i1 to i32
    %c0_i32_7 = arith.constant 0 : i32
    %13 = arith.cmpi ne, %12, %c0_i32_7 : i32
    scf.if %13 {
      %20 = arith.subf %0, %1 : vector<128x64xf32>
      %cst_10 = arith.constant 9.99999997E-7 : f32
      %21 = vector.broadcast %cst_10 : f32 to vector<128x64xf32>
      %22 = arith.addf %20, %21 : vector<128x64xf32>
      %23 = arith.mulf %22, %22 : vector<128x64xf32>
      %cst_11 = arith.constant dense<0.000000e+00> : vector<128xf32>
      %24 = vector.multi_reduction <add>, %23, %cst_11 [1] : vector<128x64xf32> to vector<128xf32>
      %25 = vector.shape_cast %24 : vector<128xf32> to vector<128x1xf32>
      %26 = math.sqrt %25 : vector<128x1xf32>
      %c0_12 = arith.constant 0 : index
      %c0_13 = arith.constant 0 : index
      %27 = vector.load %arg11[%c0_12, %c0_13] : memref<128x1xf32, #tpu.memory_space<vmem>>, vector<128x1xf32>
      tpu.vector_store %arg11[%c0_12, %c0_13], %26 {strides = array<i32>} : memref<128x1xf32, #tpu.memory_space<vmem>>, vector<128x1xf32>,
      %28 = tpu.iota {dimensions = array<i32: 0>} : vector<128x128xi32>
      %29 = tpu.iota {dimensions = array<i32: 1>} : vector<128x128xi32>
      %30 = arith.cmpi eq, %28, %29 : vector<128x128xi32>
      %cst_14 = arith.constant 0x7F800000 : f32
      %31 = vector.broadcast %cst_14 : f32 to vector<128x128xf32>
      %32 = arith.select %30, %31, %10 : vector<128x128xi1>, vector<128x128xf32>
      %cst_15 = arith.constant dense<0x7F800000> : vector<128xf32>
      %33 = vector.multi_reduction <minimumf>, %32, %cst_15 [1] : vector<128x128xf32> to vector<128xf32>
      %34 = vector.shape_cast %33 : vector<128xf32> to vector<128x1xf32>
      %35 = vector.broadcast %34 : vector<128x1xf32> to vector<128x128xf32>
      %36 = arith.cmpf ole, %32, %35 : vector<128x128xf32>
      %c0_16 = arith.constant 0 : index
      %c0_17 = arith.constant 0 : index
      %37 = vector.load %arg5[%c0_16, %c0_17] : memref<1x128xf32, #tpu.memory_space<vmem>>, vector<1x128xf32>
      %cst_18 = arith.constant 0x7F800000 : f32
      %38 = vector.shape_cast %37 : vector<1x128xf32> to vector<1x128xf32>
      %39 = vector.broadcast %38 : vector<1x128xf32> to vector<128x128xf32>
      %40 = vector.broadcast %cst_18 : f32 to vector<128x128xf32>
      %41 = arith.select %36, %39, %40 : vector<128x128xi1>, vector<128x128xf32>
      %cst_19 = arith.constant dense<0x7F800000> : vector<128xf32>
      %42 = vector.multi_reduction <minimumf>, %41, %cst_19 [1] : vector<128x128xf32> to vector<128xf32>
      %43 = vector.shape_cast %42 : vector<128xf32> to vector<128x1xf32>
      %c0_20 = arith.constant 0 : index
      %c0_21 = arith.constant 0 : index
      %44 = vector.load %arg7[%c0_20, %c0_21] : memref<128x1xf32, #tpu.memory_space<vmem>>, vector<128x1xf32>
      %45 = arith.cmpf olt, %34, %44 : vector<128x1xf32>
      %c0_22 = arith.constant 0 : index
      %c0_23 = arith.constant 0 : index
      %46 = vector.load %arg7[%c0_22, %c0_23] : memref<128x1xf32, #tpu.memory_space<vmem>>, vector<128x1xf32>
      %47 = arith.select %45, %34, %46 : vector<128x1xi1>, vector<128x1xf32>
      %c0_24 = arith.constant 0 : index
      %c0_25 = arith.constant 0 : index
      %48 = vector.load %arg7[%c0_24, %c0_25] : memref<128x1xf32, #tpu.memory_space<vmem>>, vector<128x1xf32>
      tpu.vector_store %arg7[%c0_24, %c0_25], %47 {strides = array<i32>} : memref<128x1xf32, #tpu.memory_space<vmem>>, vector<128x1xf32>,
      %c0_26 = arith.constant 0 : index
      %c0_27 = arith.constant 0 : index
      %49 = vector.load %arg8[%c0_26, %c0_27] : memref<128x1xf32, #tpu.memory_space<vmem>>, vector<128x1xf32>
      %50 = arith.select %45, %43, %49 : vector<128x1xi1>, vector<128x1xf32>
      %c0_28 = arith.constant 0 : index
      %c0_29 = arith.constant 0 : index
      %51 = vector.load %arg8[%c0_28, %c0_29] : memref<128x1xf32, #tpu.memory_space<vmem>>, vector<128x1xf32>
      tpu.vector_store %arg8[%c0_28, %c0_29], %50 {strides = array<i32>} : memref<128x1xf32, #tpu.memory_space<vmem>>, vector<128x1xf32>,
    } else {
    }
    %14 = arith.cmpi ne, %arg0, %arg1 : i32
    %15 = arith.extui %14 : i1 to i32
    %c0_i32_8 = arith.constant 0 : i32
    %16 = arith.cmpi ne, %15, %c0_i32_8 : i32
    scf.if %16 {
      %cst_10 = arith.constant dense<0x7F800000> : vector<128xf32>
      %20 = vector.multi_reduction <minimumf>, %10, %cst_10 [1] : vector<128x128xf32> to vector<128xf32>
      %21 = vector.shape_cast %20 : vector<128xf32> to vector<128x1xf32>
      %22 = vector.broadcast %21 : vector<128x1xf32> to vector<128x128xf32>
      %23 = arith.cmpf ole, %10, %22 : vector<128x128xf32>
      %c0_11 = arith.constant 0 : index
      %c0_12 = arith.constant 0 : index
      %24 = vector.load %arg5[%c0_11, %c0_12] : memref<1x128xf32, #tpu.memory_space<vmem>>, vector<1x128xf32>
      %cst_13 = arith.constant 0x7F800000 : f32
      %25 = vector.shape_cast %24 : vector<1x128xf32> to vector<1x128xf32>
      %26 = vector.broadcast %25 : vector<1x128xf32> to vector<128x128xf32>
      %27 = vector.broadcast %cst_13 : f32 to vector<128x128xf32>
      %28 = arith.select %23, %26, %27 : vector<128x128xi1>, vector<128x128xf32>
      %cst_14 = arith.constant dense<0x7F800000> : vector<128xf32>
      %29 = vector.multi_reduction <minimumf>, %28, %cst_14 [1] : vector<128x128xf32> to vector<128xf32>
      %30 = vector.shape_cast %29 : vector<128xf32> to vector<128x1xf32>
      %c0_15 = arith.constant 0 : index
      %c0_16 = arith.constant 0 : index
      %31 = vector.load %arg7[%c0_15, %c0_16] : memref<128x1xf32, #tpu.memory_space<vmem>>, vector<128x1xf32>
      %32 = arith.cmpf olt, %21, %31 : vector<128x1xf32>
      %c0_17 = arith.constant 0 : index
      %c0_18 = arith.constant 0 : index
      %33 = vector.load %arg7[%c0_17, %c0_18] : memref<128x1xf32, #tpu.memory_space<vmem>>, vector<128x1xf32>
      %34 = arith.select %32, %21, %33 : vector<128x1xi1>, vector<128x1xf32>
      %c0_19 = arith.constant 0 : index
      %c0_20 = arith.constant 0 : index
      %35 = vector.load %arg7[%c0_19, %c0_20] : memref<128x1xf32, #tpu.memory_space<vmem>>, vector<128x1xf32>
      tpu.vector_store %arg7[%c0_19, %c0_20], %34 {strides = array<i32>} : memref<128x1xf32, #tpu.memory_space<vmem>>, vector<128x1xf32>,
      %c0_21 = arith.constant 0 : index
      %c0_22 = arith.constant 0 : index
      %36 = vector.load %arg8[%c0_21, %c0_22] : memref<128x1xf32, #tpu.memory_space<vmem>>, vector<128x1xf32>
      %37 = arith.select %32, %30, %36 : vector<128x1xi1>, vector<128x1xf32>
      %c0_23 = arith.constant 0 : index
      %c0_24 = arith.constant 0 : index
      %38 = vector.load %arg8[%c0_23, %c0_24] : memref<128x1xf32, #tpu.memory_space<vmem>>, vector<128x1xf32>
      tpu.vector_store %arg8[%c0_23, %c0_24], %37 {strides = array<i32>} : memref<128x1xf32, #tpu.memory_space<vmem>>, vector<128x1xf32>,
    } else {
    }
    %c1_i32 = arith.constant 1 : i32
    %17 = arith.cmpi eq, %arg1, %c1_i32 : i32
    %18 = arith.extui %17 : i1 to i32
    %c0_i32_9 = arith.constant 0 : i32
    %19 = arith.cmpi ne, %18, %c0_i32_9 : i32
    scf.if %19 {
      %c0_10 = arith.constant 0 : index
      %c0_11 = arith.constant 0 : index
      %20 = vector.load %arg9[%c0_10, %c0_11] : memref<128x1xf32, #tpu.memory_space<vmem>>, vector<128x1xf32>
      %c0_12 = arith.constant 0 : index
      %c0_13 = arith.constant 0 : index
      %21 = vector.load %arg7[%c0_12, %c0_13] : memref<128x1xf32, #tpu.memory_space<vmem>>, vector<128x1xf32>
      %22 = arith.addf %20, %21 : vector<128x1xf32>
      %c0_14 = arith.constant 0 : index
      %c0_15 = arith.constant 0 : index
      %23 = vector.load %arg10[%c0_14, %c0_15] : memref<128x1xf32, #tpu.memory_space<vmem>>, vector<128x1xf32>
      %c0_16 = arith.constant 0 : index
      %c0_17 = arith.constant 0 : index
      %24 = vector.load %arg8[%c0_16, %c0_17] : memref<128x1xf32, #tpu.memory_space<vmem>>, vector<128x1xf32>
      %25 = arith.subf %23, %24 : vector<128x1xf32>
      %cst_18 = arith.constant 2.000000e-06 : f32
      %26 = vector.broadcast %cst_18 : f32 to vector<128x1xf32>
      %27 = arith.mulf %26, %25 : vector<128x1xf32>
      %28 = arith.addf %22, %27 : vector<128x1xf32>
      %cst_19 = arith.constant 6.400000e-11 : f32
      %29 = vector.broadcast %cst_19 : f32 to vector<128x1xf32>
      %30 = arith.addf %28, %29 : vector<128x1xf32>
      %cst_20 = arith.constant 0.000000e+00 : f32
      %31 = vector.broadcast %cst_20 : f32 to vector<128x1xf32>
      %32 = arith.maximumf %30, %31 : vector<128x1xf32>
      %33 = math.sqrt %32 : vector<128x1xf32>
      %c0_21 = arith.constant 0 : index
      %c0_22 = arith.constant 0 : index
      %34 = vector.load %arg11[%c0_21, %c0_22] : memref<128x1xf32, #tpu.memory_space<vmem>>, vector<128x1xf32>
      %35 = arith.subf %34, %33 : vector<128x1xf32>
      %cst_23 = arith.constant 2.000000e-01 : f32
      %36 = vector.broadcast %cst_23 : f32 to vector<128x1xf32>
      %37 = arith.addf %35, %36 : vector<128x1xf32>
      %cst_24 = arith.constant 0.000000e+00 : f32
      %38 = vector.broadcast %cst_24 : f32 to vector<128x1xf32>
      %39 = arith.maximumf %37, %38 : vector<128x1xf32>
      %c0_25 = arith.constant 0 : index
      %c0_26 = arith.constant 0 : index
      %40 = vector.load %arg6[%c0_25, %c0_26] : memref<128x1xf32, #tpu.memory_space<vmem>>, vector<128x1xf32>
      tpu.vector_store %arg6[%c0_25, %c0_26], %39 {strides = array<i32>} : memref<128x1xf32, #tpu.memory_space<vmem>>, vector<128x1xf32>,
    } else {
    }
    return
  }
  func.func @transform_0(%arg0: i32, %arg1: i32) -> (i32, i32) {
    %c0_i32 = arith.constant 0 : i32
    %c0_i32_0 = arith.constant 0 : i32
    return %arg0, %c0_i32 : i32, i32
  }
  func.func @transform_1(%arg0: i32, %arg1: i32) -> (i32, i32) {
    %c0_i32 = arith.constant 0 : i32
    %c0_i32_0 = arith.constant 0 : i32
    return %arg1, %c0_i32 : i32, i32
  }
  func.func @transform_2(%arg0: i32, %arg1: i32) -> (i32, i32) {
    %c0_i32 = arith.constant 0 : i32
    %c0_i32_0 = arith.constant 0 : i32
    return %c0_i32, %arg1 : i32, i32
  }
  func.func @transform_3(%arg0: i32, %arg1: i32) -> (i32, i32) {
    %c0_i32 = arith.constant 0 : i32
    %c0_i32_0 = arith.constant 0 : i32
    return %c0_i32, %arg1 : i32, i32
  }
  func.func @transform_4(%arg0: i32, %arg1: i32) -> (i32, i32) {
    %c0_i32 = arith.constant 0 : i32
    %c0_i32_0 = arith.constant 0 : i32
    return %arg0, %c0_i32 : i32, i32
  }
}

</mosaic_0001>

<llo_original>
// kernel: tpu_custom_call.1
$region0: #{tpu_custom_call.1}
  #allocation0 [shape = 'u32[]', space=smem, size = 0x4, offset = 0x4, fixed_abs, tag = 'smem constant byte address 0x4 - core index']
  #allocation1 [shape = 'u32[72,128]{1,0:T(1,128)}', space=vmem, size = 0x9000, scoped, tag = 'internal scratch']
  #allocation2 [shape = 'f32[128,1]{1,0:T(8,128)}', space=vmem, size = 0x10000, scoped, tag = 'scratch operand']
  #allocation3 [shape = 'f32[128,1]{1,0:T(8,128)}', space=vmem, size = 0x10000, scoped, tag = 'scratch operand']
  #allocation4 [shape = 'f32[128,1]{1,0:T(8,128)}', space=vmem, size = 0x10000, scoped, tag = 'scratch operand']
  #allocation5 [shape = 'f32[128,1]{1,0:T(8,128)}', space=vmem, size = 0x10000, scoped, tag = 'scratch operand']
  #allocation6 [shape = 'f32[128,1]{1,0:T(8,128)}', space=vmem, size = 0x10000, scoped, tag = 'scratch operand']
  %s0 = inlined_call_operand.vmem [shape: f32[256,64], index: 0, kind: input, shape index: {}]
  %s1 = inlined_call_operand.vmem [shape: f32[256,64], index: 1, kind: input, shape index: {}]
  %s2 = inlined_call_operand.vmem [shape: f32[1,256], index: 2, kind: input, shape index: {}]
  %s3 = inlined_call_operand.vmem [shape: f32[1,256], index: 3, kind: input, shape index: {}]
  %s4 = inlined_call_operand.vmem [shape: f32[256,1], index: 4, kind: output, shape index: {}]
  %s5 = sld [smem:[#allocation0]]
  $region65: #{tpu_custom_call.1} parent=0
    _
  %s7 = ssub.s32 1, %s5
  %s8 = scalar_select 0, %s7, %s5
  loop: start=0, step=1, limit=6
  $region2: #{tpu_custom_call.1} parent=0 // loop_pre_header
    _
  $region3: #{tpu_custom_call.1} parent=0 // loop_header
    %s10 = sphi 0, %s14
    %p11 = scmp.ge.s32.totalorder %s10, 6
    %s17 = sphi 0, %s29
    %s18 = sphi 0, %s25
    %s19 = sphi 0, %s17
    %s20 = sphi 0, %s18
    %s21 = sphi 0, %s19
    %s22 = sphi 0, %s20
    %s32 = sphi 0, %s34
    %s35 = sphi 0, %s32
    %s36 = sphi 0, %s35
    %s52 = sphi 0, %s36
    %s58 = sphi 0, %s60
    %s61 = sphi 0, %s58
    %s62 = sphi 0, %s61
    %s78 = sphi 0, %s62
    %s84 = sphi 0, %s86
    %s87 = sphi 0, %s84
    %s88 = sphi 0, %s87
    %s104 = sphi 0, %s88
    %s110 = sphi 0, %s112
    %s113 = sphi 0, %s110
    %s114 = sphi 0, %s113
    %s130 = sphi 0, %s114
    %s136 = sphi 0, %s138
    %s139 = sphi 0, %s136
    %s140 = sphi 0, %s139
    %s156 = sphi 0, %s140
  $region4: #{tpu_custom_call.1} parent=0 // loop_header_branch
    %13 = sbr.rel (%p11) target = $region8
  $region5: #{tpu_custom_call.1} parent=0 // loop_body
    %s15 = ssub.s32 %s10, 1
    %s16 = ssub.s32 %s10, 2
    %s23 = sadd.s32 1, %s18
    %p24 = scmp.ge.s32.totalorder %s23, 2
    %s25 = scalar_select %p24, 0, %s23
    %s26 = sadd.s32 1, %s17
    %s27 = scalar_select %p24, %s26, %s17
    %p28 = scmp.ge.s32.totalorder %s27, 2
    %s29 = scalar_select %p28, 0, %s27
    %s30 = ssub.s32 %s17, %s29
    %p31 = scmp.eq.s32.totalorder %s30, 0
    %s33 = sadd.s32 %s32, 1
    %s34 = scalar_select %p31, %s32, %s33
    %p37 = pneg %p31
    %p38 = scmp.eq.s32.totalorder %s10, 3
    %p39 = por %p37, %p38
    %p40 = scmp.ne.s32.totalorder %s32, %s35
    %p41 = scmp.eq.s32.totalorder %s10, 0
    %p42 = por %p40, %p41
    %p43 = scmp.ne.s32.totalorder %s32, %s35
    %p44 = scmp.eq.s32.totalorder %s15, 3
    %p45 = por %p43, %p44
    %p46 = scmp.ne.s32.totalorder %s35, %s36
    %p47 = scmp.eq.s32.totalorder %s15, 0
    %p48 = por %p46, %p47
    %p49 = scmp.ne.s32.totalorder %s35, %s36
    %p50 = scmp.eq.s32.totalorder %s16, 3
    %p51 = por %p49, %p50
    %p53 = scmp.ne.s32.totalorder %s36, %s52
    %p54 = scmp.eq.s32.totalorder %s16, 0
    %p55 = por %p53, %p54
    %s56 = ssub.s32 %s18, %s25
    %p57 = scmp.eq.s32.totalorder %s56, 0
    %s59 = sadd.s32 %s58, 1
    %s60 = scalar_select %p57, %s58, %s59
    %p63 = pneg %p57
    %p64 = scmp.eq.s32.totalorder %s10, 3
    %p65 = por %p63, %p64
    %p66 = scmp.ne.s32.totalorder %s58, %s61
    %p67 = scmp.eq.s32.totalorder %s10, 0
    %p68 = por %p66, %p67
    %p69 = scmp.ne.s32.totalorder %s58, %s61
    %p70 = scmp.eq.s32.totalorder %s15, 3
    %p71 = por %p69, %p70
    %p72 = scmp.ne.s32.totalorder %s61, %s62
    %p73 = scmp.eq.s32.totalorder %s15, 0
    %p74 = por %p72, %p73
    %p75 = scmp.ne.s32.totalorder %s61, %s62
    %p76 = scmp.eq.s32.totalorder %s16, 3
    %p77 = por %p75, %p76
    %p79 = scmp.ne.s32.totalorder %s62, %s78
    %p80 = scmp.eq.s32.totalorder %s16, 0
    %p81 = por %p79, %p80
    %s82 = ssub.s32 %s18, %s25
    %p83 = scmp.eq.s32.totalorder %s82, 0
    %s85 = sadd.s32 %s84, 1
    %s86 = scalar_select %p83, %s84, %s85
    %p89 = pneg %p83
    %p90 = scmp.eq.s32.totalorder %s10, 3
    %p91 = por %p89, %p90
    %p92 = scmp.ne.s32.totalorder %s84, %s87
    %p93 = scmp.eq.s32.totalorder %s10, 0
    %p94 = por %p92, %p93
    %p95 = scmp.ne.s32.totalorder %s84, %s87
    %p96 = scmp.eq.s32.totalorder %s15, 3
    %p97 = por %p95, %p96
    %p98 = scmp.ne.s32.totalorder %s87, %s88
    %p99 = scmp.eq.s32.totalorder %s15, 0
    %p100 = por %p98, %p99
    %p101 = scmp.ne.s32.totalorder %s87, %s88
    %p102 = scmp.eq.s32.totalorder %s16, 3
    %p103 = por %p101, %p102
    %p105 = scmp.ne.s32.totalorder %s88, %s104
    %p106 = scmp.eq.s32.totalorder %s16, 0
    %p107 = por %p105, %p106
    %s108 = ssub.s32 %s18, %s25
    %p109 = scmp.eq.s32.totalorder %s108, 0
    %s111 = sadd.s32 %s110, 1
    %s112 = scalar_select %p109, %s110, %s111
    %p115 = pneg %p109
    %p116 = scmp.eq.s32.totalorder %s10, 3
    %p117 = por %p115, %p116
    %p118 = scmp.ne.s32.totalorder %s110, %s113
    %p119 = scmp.eq.s32.totalorder %s10, 0
    %p120 = por %p118, %p119
    %p121 = scmp.ne.s32.totalorder %s110, %s113
    %p122 = scmp.eq.s32.totalorder %s15, 3
    %p123 = por %p121, %p122
    %p124 = scmp.ne.s32.totalorder %s113, %s114
    %p125 = scmp.eq.s32.totalorder %s15, 0
    %p126 = por %p124, %p125
    %p127 = scmp.ne.s32.totalorder %s113, %s114
    %p128 = scmp.eq.s32.totalorder %s16, 3
    %p129 = por %p127, %p128
    %p131 = scmp.ne.s32.totalorder %s114, %s130
    %p132 = scmp.eq.s32.totalorder %s16, 0
    %p133 = por %p131, %p132
    %s134 = ssub.s32 %s17, %s29
    %p135 = scmp.eq.s32.totalorder %s134, 0
    %s137 = sadd.s32 %s136, 1
    %s138 = scalar_select %p135, %s136, %s137
    %p141 = pneg %p135
    %p142 = scmp.eq.s32.totalorder %s10, 3
    %p143 = por %p141, %p142
    %p144 = scmp.ne.s32.totalorder %s136, %s139
    %p145 = scmp.eq.s32.totalorder %s10, 0
    %p146 = por %p144, %p145
    %p147 = scmp.ne.s32.totalorder %s136, %s139
    %p148 = scmp.eq.s32.totalorder %s15, 3
    %p149 = por %p147, %p148
    %p150 = scmp.ne.s32.totalorder %s139, %s140
    %p151 = scmp.eq.s32.totalorder %s15, 0
    %p152 = por %p150, %p151
    %p153 = scmp.ne.s32.totalorder %s139, %s140
    %p154 = scmp.eq.s32.totalorder %s16, 3
    %p155 = por %p153, %p154
    %p157 = scmp.ne.s32.totalorder %s140, %s156
    %p158 = scmp.eq.s32.totalorder %s16, 0
    %p159 = por %p157, %p158
    %p160 = scmp.le.s32.totalorder 1, %s10
    %p161 = scmp.lt.s32.totalorder %s10, 5
    %p162 = pnand %p160, %p161
    %p163 = pneg %p162
    // Predicated region
    $region9: #{tpu_custom_call.1} parent=5 // pred_check
      _
    $region10: #{tpu_custom_call.1} parent=5 // pred_check_branch
      %165 = sbr.rel (%p162) target = $region12
    $region11: #{tpu_custom_call.1} parent=5 // pred_region
      %s166 = ssub.s32 %s10, 1
    $region12: #{tpu_custom_call.1} parent=5 // pred_fallthru
      _
    %p167 = scmp.lt.s32.totalorder %s10, 4
    // Predicated region
    $region13: #{tpu_custom_call.1} parent=5 // pred_check
      %p168 = pneg %p167
    $region14: #{tpu_custom_call.1} parent=5 // pred_check_branch
      %170 = sbr.rel (%p168) target = $region16
    $region15: #{tpu_custom_call.1} parent=5 // pred_region
      // Predicated region
      $region17: #{tpu_custom_call.1} parent=15 // pred_check
        %p171 = pneg %p42
      $region18: #{tpu_custom_call.1} parent=15 // pred_check_branch
        %173 = sbr.rel (%p171) target = $region20
      $region19: #{tpu_custom_call.1} parent=15 // pred_region
        %s174 = smul.u32 16, %s17
        %p175 = scmp.lt.s32.totalorder %s174, 31
        %s176 = scalar_select %p175, %s174, 31
        %s177 = smul.addr %s176, 8
        %s178 = scalar_lea.vmem %s0, %s177
        %s179 = smul.u32 16, %s17
      $region20: #{tpu_custom_call.1} parent=15 // pred_fallthru
        _
      // Predicated region
      $region21: #{tpu_custom_call.1} parent=15 // pred_check
        %p180 = pneg %p68
      $region22: #{tpu_custom_call.1} parent=15 // pred_check_branch
        %182 = sbr.rel (%p180) target = $region24
      $region23: #{tpu_custom_call.1} parent=15 // pred_region
        %s183 = smul.u32 16, %s18
        %p184 = scmp.lt.s32.totalorder %s183, 31
        %s185 = scalar_select %p184, %s183, 31
        %s186 = smul.addr %s185, 8
        %s187 = scalar_lea.vmem %s1, %s186
        %s188 = smul.u32 16, %s18
      $region24: #{tpu_custom_call.1} parent=15 // pred_fallthru
        _
      // Predicated region
      $region25: #{tpu_custom_call.1} parent=15 // pred_check
        %p189 = pneg %p94
      $region26: #{tpu_custom_call.1} parent=15 // pred_check_branch
        %191 = sbr.rel (%p189) target = $region28
      $region27: #{tpu_custom_call.1} parent=15 // pred_region
        %p192 = scmp.lt.s32.totalorder %s18, 1
        %s193 = scalar_select %p192, %s18, 1
        %s194 = scalar_lea.vmem %s2, %s193
      $region28: #{tpu_custom_call.1} parent=15 // pred_fallthru
        _
      // Predicated region
      $region29: #{tpu_custom_call.1} parent=15 // pred_check
        %p195 = pneg %p120
      $region30: #{tpu_custom_call.1} parent=15 // pred_check_branch
        %197 = sbr.rel (%p195) target = $region32
      $region31: #{tpu_custom_call.1} parent=15 // pred_region
        %p198 = scmp.lt.s32.totalorder %s18, 1
        %s199 = scalar_select %p198, %s18, 1
        %s200 = scalar_lea.vmem %s3, %s199
      $region32: #{tpu_custom_call.1} parent=15 // pred_fallthru
        _
    $region16: #{tpu_custom_call.1} parent=5 // pred_fallthru
      _
    %p201 = scmp.le.s32.totalorder 1, %s10
    %p202 = scmp.lt.s32.totalorder %s10, 5
    %p203 = pnand %p201, %p202
    %p204 = pneg %p203
    // Predicated region
    $region33: #{tpu_custom_call.1} parent=5 // pred_check
      _
    $region34: #{tpu_custom_call.1} parent=5 // pred_check_branch
      %206 = sbr.rel (%p203) target = $region36
    $region35: #{tpu_custom_call.1} parent=5 // pred_region
      %s207 = ssub.s32 %s10, 1
      %s208 = smul.u32 16, %s19
      %p209 = scmp.lt.s32.totalorder %s208, 31
      %s210 = scalar_select %p209, %s208, 31
      %s211 = smul.addr %s210, 8
      %s212 = scalar_lea.vmem %s0, %s211
      %p213 = pneg %p48
      %p214 = pneg %p45
      %s215 = smul.u32 16, %s20
      %p216 = scmp.lt.s32.totalorder %s215, 31
      %s217 = scalar_select %p216, %s215, 31
      %s218 = smul.addr %s217, 8
      %s219 = scalar_lea.vmem %s1, %s218
      %p220 = pneg %p74
      %p221 = pneg %p71
      %p222 = scmp.lt.s32.totalorder %s20, 1
      %s223 = scalar_select %p222, %s20, 1
      %s224 = scalar_lea.vmem %s2, %s223
      %p225 = pneg %p100
      %p226 = pneg %p97
      %p227 = scmp.lt.s32.totalorder %s20, 1
      %s228 = scalar_select %p227, %s20, 1
      %s229 = scalar_lea.vmem %s3, %s228
      %p230 = pneg %p126
      %p231 = pneg %p123
      %p232 = pneg %p152
      %p233 = pneg %p149
      %s234 = smul.u32 16, %s19
      %p235 = scmp.lt.s32.totalorder %s234, 31
      %s236 = scalar_select %p235, %s234, 31
      %s237 = smul.addr %s236, 8
      %s238 = scalar_lea.vmem %s4, %s237
      %s239 = smul.u32 16, %s19
      %p240 = scmp.lt.s32.totalorder %s239, 31
      %s241 = scalar_select %p240, %s239, 31
      %s242 = smul.addr %s241, 8
      %s243 = scalar_lea.vmem %s0, %s242
      %s244 = smul.u32 16, %s19
      %s245 = smul.u32 16, %s20
      %p246 = scmp.lt.s32.totalorder %s245, 31
      %s247 = scalar_select %p246, %s245, 31
      %s248 = smul.addr %s247, 8
      %s249 = scalar_lea.vmem %s1, %s248
      %s250 = smul.u32 16, %s20
      %p251 = scmp.lt.s32.totalorder %s20, 1
      %s252 = scalar_select %p251, %s20, 1
      %s253 = scalar_lea.vmem %s2, %s252
      %p254 = scmp.lt.s32.totalorder %s20, 1
      %s255 = scalar_select %p254, %s20, 1
      %s256 = scalar_lea.vmem %s3, %s255
      %s257 = smul.u32 16, %s19
      %p258 = scmp.lt.s32.totalorder %s257, 31
      %s259 = scalar_select %p258, %s257, 31
      %s260 = smul.addr %s259, 8
      %s261 = scalar_lea.vmem %s4, %s260
      %s262 = smul.u32 16, %s19
      %v263 = vld [vmem:[%s243] sm:$0xff]
      %v264 = vld [vmem:[%s243 + $0x8] sm:$0xff]
      %v265 = vld [vmem:[%s243 + $0x10] sm:$0xff]
      %v266 = vld [vmem:[%s243 + $0x18] sm:$0xff]
      %v267 = vld [vmem:[%s243 + $0x20] sm:$0xff]
      %v268 = vld [vmem:[%s243 + $0x28] sm:$0xff]
      %v269 = vld [vmem:[%s243 + $0x30] sm:$0xff]
      %v270 = vld [vmem:[%s243 + $0x38] sm:$0xff]
      %v271 = vld [vmem:[%s243 + $0x40] sm:$0xff]
      %v272 = vld [vmem:[%s243 + $0x48] sm:$0xff]
      %v273 = vld [vmem:[%s243 + $0x50] sm:$0xff]
      %v274 = vld [vmem:[%s243 + $0x58] sm:$0xff]
      %v275 = vld [vmem:[%s243 + $0x60] sm:$0xff]
      %v276 = vld [vmem:[%s243 + $0x68] sm:$0xff]
      %v277 = vld [vmem:[%s243 + $0x70] sm:$0xff]
      %v278 = vld [vmem:[%s243 + $0x78] sm:$0xff]
      %v279 = vld [vmem:[%s249] sm:$0xff]
      %v280 = vld [vmem:[%s249 + $0x8] sm:$0xff]
      %v281 = vld [vmem:[%s249 + $0x10] sm:$0xff]
      %v282 = vld [vmem:[%s249 + $0x18] sm:$0xff]
      %v283 = vld [vmem:[%s249 + $0x20] sm:$0xff]
      %v284 = vld [vmem:[%s249 + $0x28] sm:$0xff]
      %v285 = vld [vmem:[%s249 + $0x30] sm:$0xff]
      %v286 = vld [vmem:[%s249 + $0x38] sm:$0xff]
      %v287 = vld [vmem:[%s249 + $0x40] sm:$0xff]
      %v288 = vld [vmem:[%s249 + $0x48] sm:$0xff]
      %v289 = vld [vmem:[%s249 + $0x50] sm:$0xff]
      %v290 = vld [vmem:[%s249 + $0x58] sm:$0xff]
      %v291 = vld [vmem:[%s249 + $0x60] sm:$0xff]
      %v292 = vld [vmem:[%s249 + $0x68] sm:$0xff]
      %v293 = vld [vmem:[%s249 + $0x70] sm:$0xff]
      %v294 = vld [vmem:[%s249 + $0x78] sm:$0xff]
      %p295 = scmp.eq.s32.totalorder %s20, 0
      // Predicated region
      $region37: #{tpu_custom_call.1} parent=35 // pred_check
        %p296 = pneg %p295
      $region38: #{tpu_custom_call.1} parent=35 // pred_check_branch
        %298 = sbr.rel (%p296) target = $region40
      $region39: #{tpu_custom_call.1} parent=35 // pred_region
        %v299 = vmul.f32 %v263, %v263
        %v300 = vmul.f32 %v264, %v264
        %v301 = vmul.f32 %v265, %v265
        %v302 = vmul.f32 %v266, %v266
        %v303 = vmul.f32 %v267, %v267
        %v304 = vmul.f32 %v268, %v268
        %v305 = vmul.f32 %v269, %v269
        %v306 = vmul.f32 %v270, %v270
        %v307 = vmul.f32 %v271, %v271
        %v308 = vmul.f32 %v272, %v272
        %v309 = vmul.f32 %v273, %v273
        %v310 = vmul.f32 %v274, %v274
        %v311 = vmul.f32 %v275, %v275
        %v312 = vmul.f32 %v276, %v276
        %v313 = vmul.f32 %v277, %v277
        %v314 = vmul.f32 %v278, %v278
        %vm315 = vcmask 523264
        %v316 = vsel %vm315, %v299, 0.0
        %317 = vadd.xlane.f32.xlu0 %v316
        %v318 = vpop.xlane.xlu0 %317
        %v319 = vsel %vm315, %v300, 0.0
        %320 = vadd.xlane.f32.xlu0 %v319
        %v321 = vpop.xlane.xlu0 %320
        %v322 = vsel %vm315, %v301, 0.0
        %323 = vadd.xlane.f32.xlu0 %v322
        %v324 = vpop.xlane.xlu0 %323
        %v325 = vsel %vm315, %v302, 0.0
        %326 = vadd.xlane.f32.xlu0 %v325
        %v327 = vpop.xlane.xlu0 %326
        %v328 = vsel %vm315, %v303, 0.0
        %329 = vadd.xlane.f32.xlu0 %v328
        %v330 = vpop.xlane.xlu0 %329
        %v331 = vsel %vm315, %v304, 0.0
        %332 = vadd.xlane.f32.xlu0 %v331
        %v333 = vpop.xlane.xlu0 %332
        %v334 = vsel %vm315, %v305, 0.0
        %335 = vadd.xlane.f32.xlu0 %v334
        %v336 = vpop.xlane.xlu0 %335
        %v337 = vsel %vm315, %v306, 0.0
        %338 = vadd.xlane.f32.xlu0 %v337
        %v339 = vpop.xlane.xlu0 %338
        %v340 = vsel %vm315, %v307, 0.0
        %341 = vadd.xlane.f32.xlu0 %v340
        %v342 = vpop.xlane.xlu0 %341
        %v343 = vsel %vm315, %v308, 0.0
        %344 = vadd.xlane.f32.xlu0 %v343
        %v345 = vpop.xlane.xlu0 %344
        %v346 = vsel %vm315, %v309, 0.0
        %347 = vadd.xlane.f32.xlu0 %v346
        %v348 = vpop.xlane.xlu0 %347
        %v349 = vsel %vm315, %v310, 0.0
        %350 = vadd.xlane.f32.xlu0 %v349
        %v351 = vpop.xlane.xlu0 %350
        %v352 = vsel %vm315, %v311, 0.0
        %353 = vadd.xlane.f32.xlu0 %v352
        %v354 = vpop.xlane.xlu0 %353
        %v355 = vsel %vm315, %v312, 0.0
        %356 = vadd.xlane.f32.xlu0 %v355
        %v357 = vpop.xlane.xlu0 %356
        %v358 = vsel %vm315, %v313, 0.0
        %359 = vadd.xlane.f32.xlu0 %v358
        %v360 = vpop.xlane.xlu0 %359
        %v361 = vsel %vm315, %v314, 0.0
        %362 = vadd.xlane.f32.xlu0 %v361
        %v363 = vpop.xlane.xlu0 %362
        %vm364 = vcmask 7168
        %365 = vst.msk [vmem:[#allocation4] sm:$0xff] %vm364, %v318
        %366 = vst.msk [vmem:[#allocation4 + $0x8] sm:$0xff] %vm364, %v321
        %367 = vst.msk [vmem:[#allocation4 + $0x10] sm:$0xff] %vm364, %v324
        %368 = vst.msk [vmem:[#allocation4 + $0x18] sm:$0xff] %vm364, %v327
        %369 = vst.msk [vmem:[#allocation4 + $0x20] sm:$0xff] %vm364, %v330
        %370 = vst.msk [vmem:[#allocation4 + $0x28] sm:$0xff] %vm364, %v333
        %371 = vst.msk [vmem:[#allocation4 + $0x30] sm:$0xff] %vm364, %v336
        %372 = vst.msk [vmem:[#allocation4 + $0x38] sm:$0xff] %vm364, %v339
        %373 = vst.msk [vmem:[#allocation4 + $0x40] sm:$0xff] %vm364, %v342
        %374 = vst.msk [vmem:[#allocation4 + $0x48] sm:$0xff] %vm364, %v345
        %375 = vst.msk [vmem:[#allocation4 + $0x50] sm:$0xff] %vm364, %v348
        %376 = vst.msk [vmem:[#allocation4 + $0x58] sm:$0xff] %vm364, %v351
        %377 = vst.msk [vmem:[#allocation4 + $0x60] sm:$0xff] %vm364, %v354
        %378 = vst.msk [vmem:[#allocation4 + $0x68] sm:$0xff] %vm364, %v357
        %379 = vst.msk [vmem:[#allocation4 + $0x70] sm:$0xff] %vm364, %v360
        %380 = vst.msk [vmem:[#allocation4 + $0x78] sm:$0xff] %vm364, %v363
        %v381 = vsel %vm315, %v263, 0.0
        %382 = vadd.xlane.f32.xlu0 %v381
        %v383 = vpop.xlane.xlu0 %382
        %v384 = vsel %vm315, %v264, 0.0
        %385 = vadd.xlane.f32.xlu0 %v384
        %v386 = vpop.xlane.xlu0 %385
        %v387 = vsel %vm315, %v265, 0.0
        %388 = vadd.xlane.f32.xlu0 %v387
        %v389 = vpop.xlane.xlu0 %388
        %v390 = vsel %vm315, %v266, 0.0
        %391 = vadd.xlane.f32.xlu0 %v390
        %v392 = vpop.xlane.xlu0 %391
        %v393 = vsel %vm315, %v267, 0.0
        %394 = vadd.xlane.f32.xlu0 %v393
        %v395 = vpop.xlane.xlu0 %394
        %v396 = vsel %vm315, %v268, 0.0
        %397 = vadd.xlane.f32.xlu0 %v396
        %v398 = vpop.xlane.xlu0 %397
        %v399 = vsel %vm315, %v269, 0.0
        %400 = vadd.xlane.f32.xlu0 %v399
        %v401 = vpop.xlane.xlu0 %400
        %v402 = vsel %vm315, %v270, 0.0
        %403 = vadd.xlane.f32.xlu0 %v402
        %v404 = vpop.xlane.xlu0 %403
        %v405 = vsel %vm315, %v271, 0.0
        %406 = vadd.xlane.f32.xlu0 %v405
        %v407 = vpop.xlane.xlu0 %406
        %v408 = vsel %vm315, %v272, 0.0
        %409 = vadd.xlane.f32.xlu0 %v408
        %v410 = vpop.xlane.xlu0 %409
        %v411 = vsel %vm315, %v273, 0.0
        %412 = vadd.xlane.f32.xlu0 %v411
        %v413 = vpop.xlane.xlu0 %412
        %v414 = vsel %vm315, %v274, 0.0
        %415 = vadd.xlane.f32.xlu0 %v414
        %v416 = vpop.xlane.xlu0 %415
        %v417 = vsel %vm315, %v275, 0.0
        %418 = vadd.xlane.f32.xlu0 %v417
        %v419 = vpop.xlane.xlu0 %418
        %v420 = vsel %vm315, %v276, 0.0
        %421 = vadd.xlane.f32.xlu0 %v420
        %v422 = vpop.xlane.xlu0 %421
        %v423 = vsel %vm315, %v277, 0.0
        %424 = vadd.xlane.f32.xlu0 %v423
        %v425 = vpop.xlane.xlu0 %424
        %v426 = vsel %vm315, %v278, 0.0
        %427 = vadd.xlane.f32.xlu0 %v426
        %v428 = vpop.xlane.xlu0 %427
        %429 = vst.msk [vmem:[#allocation5] sm:$0xff] %vm364, %v383
        %430 = vst.msk [vmem:[#allocation5 + $0x8] sm:$0xff] %vm364, %v386
        %431 = vst.msk [vmem:[#allocation5 + $0x10] sm:$0xff] %vm364, %v389
        %432 = vst.msk [vmem:[#allocation5 + $0x18] sm:$0xff] %vm364, %v392
        %433 = vst.msk [vmem:[#allocation5 + $0x20] sm:$0xff] %vm364, %v395
        %434 = vst.msk [vmem:[#allocation5 + $0x28] sm:$0xff] %vm364, %v398
        %435 = vst.msk [vmem:[#allocation5 + $0x30] sm:$0xff] %vm364, %v401
        %436 = vst.msk [vmem:[#allocation5 + $0x38] sm:$0xff] %vm364, %v404
        %437 = vst.msk [vmem:[#allocation5 + $0x40] sm:$0xff] %vm364, %v407
        %438 = vst.msk [vmem:[#allocation5 + $0x48] sm:$0xff] %vm364, %v410
        %439 = vst.msk [vmem:[#allocation5 + $0x50] sm:$0xff] %vm364, %v413
        %440 = vst.msk [vmem:[#allocation5 + $0x58] sm:$0xff] %vm364, %v416
        %441 = vst.msk [vmem:[#allocation5 + $0x60] sm:$0xff] %vm364, %v419
        %442 = vst.msk [vmem:[#allocation5 + $0x68] sm:$0xff] %vm364, %v422
        %443 = vst.msk [vmem:[#allocation5 + $0x70] sm:$0xff] %vm364, %v425
        %444 = vst.msk [vmem:[#allocation5 + $0x78] sm:$0xff] %vm364, %v428
        %445 = vst.msk [vmem:[#allocation2] sm:$0xff] %vm364, inf
        %446 = vst.msk [vmem:[#allocation2 + $0x8] sm:$0xff] %vm364, inf
        %447 = vst.msk [vmem:[#allocation2 + $0x10] sm:$0xff] %vm364, inf
        %448 = vst.msk [vmem:[#allocation2 + $0x18] sm:$0xff] %vm364, inf
        %449 = vst.msk [vmem:[#allocation2 + $0x20] sm:$0xff] %vm364, inf
        %450 = vst.msk [vmem:[#allocation2 + $0x28] sm:$0xff] %vm364, inf
        %451 = vst.msk [vmem:[#allocation2 + $0x30] sm:$0xff] %vm364, inf
        %452 = vst.msk [vmem:[#allocation2 + $0x38] sm:$0xff] %vm364, inf
        %453 = vst.msk [vmem:[#allocation2 + $0x40] sm:$0xff] %vm364, inf
        %454 = vst.msk [vmem:[#allocation2 + $0x48] sm:$0xff] %vm364, inf
        %455 = vst.msk [vmem:[#allocation2 + $0x50] sm:$0xff] %vm364, inf
        %456 = vst.msk [vmem:[#allocation2 + $0x58] sm:$0xff] %vm364, inf
        %457 = vst.msk [vmem:[#allocation2 + $0x60] sm:$0xff] %vm364, inf
        %458 = vst.msk [vmem:[#allocation2 + $0x68] sm:$0xff] %vm364, inf
        %459 = vst.msk [vmem:[#allocation2 + $0x70] sm:$0xff] %vm364, inf
        %460 = vst.msk [vmem:[#allocation2 + $0x78] sm:$0xff] %vm364, inf
        %461 = vst.msk [vmem:[#allocation3] sm:$0xff] %vm364, 0.0
        %462 = vst.msk [vmem:[#allocation3 + $0x8] sm:$0xff] %vm364, 0.0
        %463 = vst.msk [vmem:[#allocation3 + $0x10] sm:$0xff] %vm364, 0.0
        %464 = vst.msk [vmem:[#allocation3 + $0x18] sm:$0xff] %vm364, 0.0
        %465 = vst.msk [vmem:[#allocation3 + $0x20] sm:$0xff] %vm364, 0.0
        %466 = vst.msk [vmem:[#allocation3 + $0x28] sm:$0xff] %vm364, 0.0
        %467 = vst.msk [vmem:[#allocation3 + $0x30] sm:$0xff] %vm364, 0.0
        %468 = vst.msk [vmem:[#allocation3 + $0x38] sm:$0xff] %vm364, 0.0
        %469 = vst.msk [vmem:[#allocation3 + $0x40] sm:$0xff] %vm364, 0.0
        %470 = vst.msk [vmem:[#allocation3 + $0x48] sm:$0xff] %vm364, 0.0
        %471 = vst.msk [vmem:[#allocation3 + $0x50] sm:$0xff] %vm364, 0.0
        %472 = vst.msk [vmem:[#allocation3 + $0x58] sm:$0xff] %vm364, 0.0
        %473 = vst.msk [vmem:[#allocation3 + $0x60] sm:$0xff] %vm364, 0.0
        %474 = vst.msk [vmem:[#allocation3 + $0x68] sm:$0xff] %vm364, 0.0
        %475 = vst.msk [vmem:[#allocation3 + $0x70] sm:$0xff] %vm364, 0.0
        %476 = vst.msk [vmem:[#allocation3 + $0x78] sm:$0xff] %vm364, 0.0
      $region40: #{tpu_custom_call.1} parent=35 // pred_fallthru
        _
      %vm477 = vcmask 523264
      %v479 = vsel %vm477, %v263, 0
      %v482 = vsel %vm477, %v264, 0
      %v485 = vsel %vm477, %v265, 0
      %v488 = vsel %vm477, %v266, 0
      %v491 = vsel %vm477, %v267, 0
      %v494 = vsel %vm477, %v268, 0
      %v497 = vsel %vm477, %v269, 0
      %v500 = vsel %vm477, %v270, 0
      %v503 = vsel %vm477, %v271, 0
      %v506 = vsel %vm477, %v272, 0
      %v509 = vsel %vm477, %v273, 0
      %v512 = vsel %vm477, %v274, 0
      %v515 = vsel %vm477, %v275, 0
      %v518 = vsel %vm477, %v276, 0
      %v521 = vsel %vm477, %v277, 0
      %v524 = vsel %vm477, %v278, 0
      %v527 = vsel %vm477, %v279, 0
      %v530 = vsel %vm477, %v280, 0
      %v533 = vsel %vm477, %v281, 0
      %v536 = vsel %vm477, %v282, 0
      %v539 = vsel %vm477, %v283, 0
      %v542 = vsel %vm477, %v284, 0
      %v545 = vsel %vm477, %v285, 0
      %v548 = vsel %vm477, %v286, 0
      %v551 = vsel %vm477, %v287, 0
      %v554 = vsel %vm477, %v288, 0
      %v557 = vsel %vm477, %v289, 0
      %v560 = vsel %vm477, %v290, 0
      %v563 = vsel %vm477, %v291, 0
      %v566 = vsel %vm477, %v292, 0
      %v569 = vsel %vm477, %v293, 0
      %v572 = vsel %vm477, %v294, 0
      %574 = vmatpush.xpose.msra.mxu0 %v572
      %575 = vmatpush.xpose.msra.mxu0 %v569
      %576 = vmatpush.xpose.msra.mxu0 %v566
      %577 = vmatpush.xpose.msra.mxu0 %v563
      %578 = vmatpush.xpose.msra.mxu0 %v560
      %579 = vmatpush.xpose.msra.mxu0 %v557
      %580 = vmatpush.xpose.msra.mxu0 %v554
      %581 = vmatpush.xpose.msra.mxu0 %v551
      %582 = vmatpush.xpose.msra.mxu0 %v548
      %583 = vmatpush.xpose.msra.mxu0 %v545
      %584 = vmatpush.xpose.msra.mxu0 %v542
      %585 = vmatpush.xpose.msra.mxu0 %v539
      %586 = vmatpush.xpose.msra.mxu0 %v536
      %587 = vmatpush.xpose.msra.mxu0 %v533
      %588 = vmatpush.xpose.msra.mxu0 %v530
      %589 = vmatpush.xpose.msra.mxu0 %v527
      %590 = vmatmul.f32.gmra.mxu0 %v479
      %v591 = vpop.f32.mrf.mxu0
      %v592 = vadd.f32 0.0, %v591
      %593 = vmatmul.f32.gmra.mxu0 %v482
      %v594 = vpop.f32.mrf.mxu0
      %v595 = vadd.f32 0.0, %v594
      %596 = vmatmul.f32.gmra.mxu0 %v485
      %v597 = vpop.f32.mrf.mxu0
      %v598 = vadd.f32 0.0, %v597
      %599 = vmatmul.f32.gmra.mxu0 %v488
      %v600 = vpop.f32.mrf.mxu0
      %v601 = vadd.f32 0.0, %v600
      %602 = vmatmul.f32.gmra.mxu0 %v491
      %v603 = vpop.f32.mrf.mxu0
      %v604 = vadd.f32 0.0, %v603
      %605 = vmatmul.f32.gmra.mxu0 %v494
      %v606 = vpop.f32.mrf.mxu0
      %v607 = vadd.f32 0.0, %v606
      %608 = vmatmul.f32.gmra.mxu0 %v497
      %v609 = vpop.f32.mrf.mxu0
      %v610 = vadd.f32 0.0, %v609
      %611 = vmatmul.f32.gmra.mxu0 %v500
      %v612 = vpop.f32.mrf.mxu0
      %v613 = vadd.f32 0.0, %v612
      %614 = vmatmul.f32.gmra.mxu0 %v503
      %v615 = vpop.f32.mrf.mxu0
      %v616 = vadd.f32 0.0, %v615
      %617 = vmatmul.f32.gmra.mxu0 %v506
      %v618 = vpop.f32.mrf.mxu0
      %v619 = vadd.f32 0.0, %v618
      %620 = vmatmul.f32.gmra.mxu0 %v509
      %v621 = vpop.f32.mrf.mxu0
      %v622 = vadd.f32 0.0, %v621
      %623 = vmatmul.f32.gmra.mxu0 %v512
      %v624 = vpop.f32.mrf.mxu0
      %v625 = vadd.f32 0.0, %v624
      %626 = vmatmul.f32.gmra.mxu0 %v515
      %v627 = vpop.f32.mrf.mxu0
      %v628 = vadd.f32 0.0, %v627
      %629 = vmatmul.f32.gmra.mxu0 %v518
      %v630 = vpop.f32.mrf.mxu0
      %v631 = vadd.f32 0.0, %v630
      %632 = vmatmul.f32.gmra.mxu0 %v521
      %v633 = vpop.f32.mrf.mxu0
      %v634 = vadd.f32 0.0, %v633
      %635 = vmatmul.f32.gmra.mxu0 %v524
      %v636 = vpop.f32.mrf.mxu0
      %v637 = vadd.f32 0.0, %v636
      %638 = vdwg.mxu0
      %v639 = vld [vmem:[%s253] sm:$0x1]
      %v640 = vmul.f32 %v592, 2.0
      %v641 = vmul.f32 %v595, 2.0
      %v642 = vmul.f32 %v598, 2.0
      %v643 = vmul.f32 %v601, 2.0
      %v644 = vmul.f32 %v604, 2.0
      %v645 = vmul.f32 %v607, 2.0
      %v646 = vmul.f32 %v610, 2.0
      %v647 = vmul.f32 %v613, 2.0
      %v648 = vmul.f32 %v616, 2.0
      %v649 = vmul.f32 %v619, 2.0
      %v650 = vmul.f32 %v622, 2.0
      %v651 = vmul.f32 %v625, 2.0
      %v652 = vmul.f32 %v628, 2.0
      %v653 = vmul.f32 %v631, 2.0
      %v654 = vmul.f32 %v634, 2.0
      %v655 = vmul.f32 %v637, 2.0
      %v657 = vperm.slane %v639, 0
      %v659 = vsub.f32 %v657, %v640
      %v660 = vsub.f32 %v657, %v641
      %v661 = vsub.f32 %v657, %v642
      %v662 = vsub.f32 %v657, %v643
      %v663 = vsub.f32 %v657, %v644
      %v664 = vsub.f32 %v657, %v645
      %v665 = vsub.f32 %v657, %v646
      %v666 = vsub.f32 %v657, %v647
      %v667 = vsub.f32 %v657, %v648
      %v668 = vsub.f32 %v657, %v649
      %v669 = vsub.f32 %v657, %v650
      %v670 = vsub.f32 %v657, %v651
      %v671 = vsub.f32 %v657, %v652
      %v672 = vsub.f32 %v657, %v653
      %v673 = vsub.f32 %v657, %v654
      %v674 = vsub.f32 %v657, %v655
      %p675 = scmp.eq.s32.totalorder %s19, %s20
      // Predicated region
      $region41: #{tpu_custom_call.1} parent=35 // pred_check
        %p676 = pneg %p675
      $region42: #{tpu_custom_call.1} parent=35 // pred_check_branch
        %678 = sbr.rel (%p676) target = $region44
      $region43: #{tpu_custom_call.1} parent=35 // pred_region
        %v679 = vsub.f32 %v263, %v279
        %v680 = vsub.f32 %v264, %v280
        %v681 = vsub.f32 %v265, %v281
        %v682 = vsub.f32 %v266, %v282
        %v683 = vsub.f32 %v267, %v283
        %v684 = vsub.f32 %v268, %v284
        %v685 = vsub.f32 %v269, %v285
        %v686 = vsub.f32 %v270, %v286
        %v687 = vsub.f32 %v271, %v287
        %v688 = vsub.f32 %v272, %v288
        %v689 = vsub.f32 %v273, %v289
        %v690 = vsub.f32 %v274, %v290
        %v691 = vsub.f32 %v275, %v291
        %v692 = vsub.f32 %v276, %v292
        %v693 = vsub.f32 %v277, %v293
        %v694 = vsub.f32 %v278, %v294
        %v695 = vadd.f32 %v679, 1e-06
        %v696 = vadd.f32 %v680, 1e-06
        %v697 = vadd.f32 %v681, 1e-06
        %v698 = vadd.f32 %v682, 1e-06
        %v699 = vadd.f32 %v683, 1e-06
        %v700 = vadd.f32 %v684, 1e-06
        %v701 = vadd.f32 %v685, 1e-06
        %v702 = vadd.f32 %v686, 1e-06
        %v703 = vadd.f32 %v687, 1e-06
        %v704 = vadd.f32 %v688, 1e-06
        %v705 = vadd.f32 %v689, 1e-06
        %v706 = vadd.f32 %v690, 1e-06
        %v707 = vadd.f32 %v691, 1e-06
        %v708 = vadd.f32 %v692, 1e-06
        %v709 = vadd.f32 %v693, 1e-06
        %v710 = vadd.f32 %v694, 1e-06
        %v711 = vmul.f32 %v695, %v695
        %v712 = vmul.f32 %v696, %v696
        %v713 = vmul.f32 %v697, %v697
        %v714 = vmul.f32 %v698, %v698
        %v715 = vmul.f32 %v699, %v699
        %v716 = vmul.f32 %v700, %v700
        %v717 = vmul.f32 %v701, %v701
        %v718 = vmul.f32 %v702, %v702
        %v719 = vmul.f32 %v703, %v703
        %v720 = vmul.f32 %v704, %v704
        %v721 = vmul.f32 %v705, %v705
        %v722 = vmul.f32 %v706, %v706
        %v723 = vmul.f32 %v707, %v707
        %v724 = vmul.f32 %v708, %v708
        %v725 = vmul.f32 %v709, %v709
        %v726 = vmul.f32 %v710, %v710
        %v727 = vsel %vm477, %v711, 0.0
        %728 = vadd.xlane.f32.xlu0 %v727
        %v729 = vpop.xlane.xlu0 %728
        %v730 = vsel %vm477, %v712, 0.0
        %731 = vadd.xlane.f32.xlu0 %v730
        %v732 = vpop.xlane.xlu0 %731
        %v733 = vsel %vm477, %v713, 0.0
        %734 = vadd.xlane.f32.xlu0 %v733
        %v735 = vpop.xlane.xlu0 %734
        %v736 = vsel %vm477, %v714, 0.0
        %737 = vadd.xlane.f32.xlu0 %v736
        %v738 = vpop.xlane.xlu0 %737
        %v739 = vsel %vm477, %v715, 0.0
        %740 = vadd.xlane.f32.xlu0 %v739
        %v741 = vpop.xlane.xlu0 %740
        %v742 = vsel %vm477, %v716, 0.0
        %743 = vadd.xlane.f32.xlu0 %v742
        %v744 = vpop.xlane.xlu0 %743
        %v745 = vsel %vm477, %v717, 0.0
        %746 = vadd.xlane.f32.xlu0 %v745
        %v747 = vpop.xlane.xlu0 %746
        %v748 = vsel %vm477, %v718, 0.0
        %749 = vadd.xlane.f32.xlu0 %v748
        %v750 = vpop.xlane.xlu0 %749
        %v751 = vsel %vm477, %v719, 0.0
        %752 = vadd.xlane.f32.xlu0 %v751
        %v753 = vpop.xlane.xlu0 %752
        %v754 = vsel %vm477, %v720, 0.0
        %755 = vadd.xlane.f32.xlu0 %v754
        %v756 = vpop.xlane.xlu0 %755
        %v757 = vsel %vm477, %v721, 0.0
        %758 = vadd.xlane.f32.xlu0 %v757
        %v759 = vpop.xlane.xlu0 %758
        %v760 = vsel %vm477, %v722, 0.0
        %761 = vadd.xlane.f32.xlu0 %v760
        %v762 = vpop.xlane.xlu0 %761
        %v763 = vsel %vm477, %v723, 0.0
        %764 = vadd.xlane.f32.xlu0 %v763
        %v765 = vpop.xlane.xlu0 %764
        %v766 = vsel %vm477, %v724, 0.0
        %767 = vadd.xlane.f32.xlu0 %v766
        %v768 = vpop.xlane.xlu0 %767
        %v769 = vsel %vm477, %v725, 0.0
        %770 = vadd.xlane.f32.xlu0 %v769
        %v771 = vpop.xlane.xlu0 %770
        %v772 = vsel %vm477, %v726, 0.0
        %773 = vadd.xlane.f32.xlu0 %v772
        %v774 = vpop.xlane.xlu0 %773
        %v775 = vrsqrt.pop %v729
        %v776 = vmul.f32 %v775, %v729
        %v777 = vmul.f32 %v776, %v775
        %v778 = vmul.f32 0.5, %v777
        %v779 = vsub.f32 1.5, %v778
        %v780 = vmul.f32 %v775, %v779
        %v781 = vmul.f32 %v729, %v780
        %vm782 = vcmp.eq.f32.partialorder %v729, inf
        %v783 = vsel %vm782, %v729, %v781
        %vm784 = vcmp.eq.f32.partialorder %v729, 0.0
        %v785 = vand.u32 %v729, 2147483648
        %v786 = vsel %vm784, %v785, %v783
        %v787 = vrsqrt.pop %v732
        %v788 = vmul.f32 %v787, %v732
        %v789 = vmul.f32 %v788, %v787
        %v790 = vmul.f32 0.5, %v789
        %v791 = vsub.f32 1.5, %v790
        %v792 = vmul.f32 %v787, %v791
        %v793 = vmul.f32 %v732, %v792
        %vm794 = vcmp.eq.f32.partialorder %v732, inf
        %v795 = vsel %vm794, %v732, %v793
        %vm796 = vcmp.eq.f32.partialorder %v732, 0.0
        %v797 = vand.u32 %v732, 2147483648
        %v798 = vsel %vm796, %v797, %v795
        %v799 = vrsqrt.pop %v735
        %v800 = vmul.f32 %v799, %v735
        %v801 = vmul.f32 %v800, %v799
        %v802 = vmul.f32 0.5, %v801
        %v803 = vsub.f32 1.5, %v802
        %v804 = vmul.f32 %v799, %v803
        %v805 = vmul.f32 %v735, %v804
        %vm806 = vcmp.eq.f32.partialorder %v735, inf
        %v807 = vsel %vm806, %v735, %v805
        %vm808 = vcmp.eq.f32.partialorder %v735, 0.0
        %v809 = vand.u32 %v735, 2147483648
        %v810 = vsel %vm808, %v809, %v807
        %v811 = vrsqrt.pop %v738
        %v812 = vmul.f32 %v811, %v738
        %v813 = vmul.f32 %v812, %v811
        %v814 = vmul.f32 0.5, %v813
        %v815 = vsub.f32 1.5, %v814
        %v816 = vmul.f32 %v811, %v815
        %v817 = vmul.f32 %v738, %v816
        %vm818 = vcmp.eq.f32.partialorder %v738, inf
        %v819 = vsel %vm818, %v738, %v817
        %vm820 = vcmp.eq.f32.partialorder %v738, 0.0
        %v821 = vand.u32 %v738, 2147483648
        %v822 = vsel %vm820, %v821, %v819
        %v823 = vrsqrt.pop %v741
        %v824 = vmul.f32 %v823, %v741
        %v825 = vmul.f32 %v824, %v823
        %v826 = vmul.f32 0.5, %v825
        %v827 = vsub.f32 1.5, %v826
        %v828 = vmul.f32 %v823, %v827
        %v829 = vmul.f32 %v741, %v828
        %vm830 = vcmp.eq.f32.partialorder %v741, inf
        %v831 = vsel %vm830, %v741, %v829
        %vm832 = vcmp.eq.f32.partialorder %v741, 0.0
        %v833 = vand.u32 %v741, 2147483648
        %v834 = vsel %vm832, %v833, %v831
        %v835 = vrsqrt.pop %v744
        %v836 = vmul.f32 %v835, %v744
        %v837 = vmul.f32 %v836, %v835
        %v838 = vmul.f32 0.5, %v837
        %v839 = vsub.f32 1.5, %v838
        %v840 = vmul.f32 %v835, %v839
        %v841 = vmul.f32 %v744, %v840
        %vm842 = vcmp.eq.f32.partialorder %v744, inf
        %v843 = vsel %vm842, %v744, %v841
        %vm844 = vcmp.eq.f32.partialorder %v744, 0.0
        %v845 = vand.u32 %v744, 2147483648
        %v846 = vsel %vm844, %v845, %v843
        %v847 = vrsqrt.pop %v747
        %v848 = vmul.f32 %v847, %v747
        %v849 = vmul.f32 %v848, %v847
        %v850 = vmul.f32 0.5, %v849
        %v851 = vsub.f32 1.5, %v850
        %v852 = vmul.f32 %v847, %v851
        %v853 = vmul.f32 %v747, %v852
        %vm854 = vcmp.eq.f32.partialorder %v747, inf
        %v855 = vsel %vm854, %v747, %v853
        %vm856 = vcmp.eq.f32.partialorder %v747, 0.0
        %v857 = vand.u32 %v747, 2147483648
        %v858 = vsel %vm856, %v857, %v855
        %v859 = vrsqrt.pop %v750
        %v860 = vmul.f32 %v859, %v750
        %v861 = vmul.f32 %v860, %v859
        %v862 = vmul.f32 0.5, %v861
        %v863 = vsub.f32 1.5, %v862
        %v864 = vmul.f32 %v859, %v863
        %v865 = vmul.f32 %v750, %v864
        %vm866 = vcmp.eq.f32.partialorder %v750, inf
        %v867 = vsel %vm866, %v750, %v865
        %vm868 = vcmp.eq.f32.partialorder %v750, 0.0
        %v869 = vand.u32 %v750, 2147483648
        %v870 = vsel %vm868, %v869, %v867
        %v871 = vrsqrt.pop %v753
        %v872 = vmul.f32 %v871, %v753
        %v873 = vmul.f32 %v872, %v871
        %v874 = vmul.f32 0.5, %v873
        %v875 = vsub.f32 1.5, %v874
        %v876 = vmul.f32 %v871, %v875
        %v877 = vmul.f32 %v753, %v876
        %vm878 = vcmp.eq.f32.partialorder %v753, inf
        %v879 = vsel %vm878, %v753, %v877
        %vm880 = vcmp.eq.f32.partialorder %v753, 0.0
        %v881 = vand.u32 %v753, 2147483648
        %v882 = vsel %vm880, %v881, %v879
        %v883 = vrsqrt.pop %v756
        %v884 = vmul.f32 %v883, %v756
        %v885 = vmul.f32 %v884, %v883
        %v886 = vmul.f32 0.5, %v885
        %v887 = vsub.f32 1.5, %v886
        %v888 = vmul.f32 %v883, %v887
        %v889 = vmul.f32 %v756, %v888
        %vm890 = vcmp.eq.f32.partialorder %v756, inf
        %v891 = vsel %vm890, %v756, %v889
        %vm892 = vcmp.eq.f32.partialorder %v756, 0.0
        %v893 = vand.u32 %v756, 2147483648
        %v894 = vsel %vm892, %v893, %v891
        %v895 = vrsqrt.pop %v759
        %v896 = vmul.f32 %v895, %v759
        %v897 = vmul.f32 %v896, %v895
        %v898 = vmul.f32 0.5, %v897
        %v899 = vsub.f32 1.5, %v898
        %v900 = vmul.f32 %v895, %v899
        %v901 = vmul.f32 %v759, %v900
        %vm902 = vcmp.eq.f32.partialorder %v759, inf
        %v903 = vsel %vm902, %v759, %v901
        %vm904 = vcmp.eq.f32.partialorder %v759, 0.0
        %v905 = vand.u32 %v759, 2147483648
        %v906 = vsel %vm904, %v905, %v903
        %v907 = vrsqrt.pop %v762
        %v908 = vmul.f32 %v907, %v762
        %v909 = vmul.f32 %v908, %v907
        %v910 = vmul.f32 0.5, %v909
        %v911 = vsub.f32 1.5, %v910
        %v912 = vmul.f32 %v907, %v911
        %v913 = vmul.f32 %v762, %v912
        %vm914 = vcmp.eq.f32.partialorder %v762, inf
        %v915 = vsel %vm914, %v762, %v913
        %vm916 = vcmp.eq.f32.partialorder %v762, 0.0
        %v917 = vand.u32 %v762, 2147483648
        %v918 = vsel %vm916, %v917, %v915
        %v919 = vrsqrt.pop %v765
        %v920 = vmul.f32 %v919, %v765
        %v921 = vmul.f32 %v920, %v919
        %v922 = vmul.f32 0.5, %v921
        %v923 = vsub.f32 1.5, %v922
        %v924 = vmul.f32 %v919, %v923
        %v925 = vmul.f32 %v765, %v924
        %vm926 = vcmp.eq.f32.partialorder %v765, inf
        %v927 = vsel %vm926, %v765, %v925
        %vm928 = vcmp.eq.f32.partialorder %v765, 0.0
        %v929 = vand.u32 %v765, 2147483648
        %v930 = vsel %vm928, %v929, %v927
        %v931 = vrsqrt.pop %v768
        %v932 = vmul.f32 %v931, %v768
        %v933 = vmul.f32 %v932, %v931
        %v934 = vmul.f32 0.5, %v933
        %v935 = vsub.f32 1.5, %v934
        %v936 = vmul.f32 %v931, %v935
        %v937 = vmul.f32 %v768, %v936
        %vm938 = vcmp.eq.f32.partialorder %v768, inf
        %v939 = vsel %vm938, %v768, %v937
        %vm940 = vcmp.eq.f32.partialorder %v768, 0.0
        %v941 = vand.u32 %v768, 2147483648
        %v942 = vsel %vm940, %v941, %v939
        %v943 = vrsqrt.pop %v771
        %v944 = vmul.f32 %v943, %v771
        %v945 = vmul.f32 %v944, %v943
        %v946 = vmul.f32 0.5, %v945
        %v947 = vsub.f32 1.5, %v946
        %v948 = vmul.f32 %v943, %v947
        %v949 = vmul.f32 %v771, %v948
        %vm950 = vcmp.eq.f32.partialorder %v771, inf
        %v951 = vsel %vm950, %v771, %v949
        %vm952 = vcmp.eq.f32.partialorder %v771, 0.0
        %v953 = vand.u32 %v771, 2147483648
        %v954 = vsel %vm952, %v953, %v951
        %v955 = vrsqrt.pop %v774
        %v956 = vmul.f32 %v955, %v774
        %v957 = vmul.f32 %v956, %v955
        %v958 = vmul.f32 0.5, %v957
        %v959 = vsub.f32 1.5, %v958
        %v960 = vmul.f32 %v955, %v959
        %v961 = vmul.f32 %v774, %v960
        %vm962 = vcmp.eq.f32.partialorder %v774, inf
        %v963 = vsel %vm962, %v774, %v961
        %vm964 = vcmp.eq.f32.partialorder %v774, 0.0
        %v965 = vand.u32 %v774, 2147483648
        %v966 = vsel %vm964, %v965, %v963
        %vm967 = vcmask 7168
        %968 = vst.msk [vmem:[#allocation6] sm:$0xff] %vm967, %v786
        %969 = vst.msk [vmem:[#allocation6 + $0x8] sm:$0xff] %vm967, %v798
        %970 = vst.msk [vmem:[#allocation6 + $0x10] sm:$0xff] %vm967, %v810
        %971 = vst.msk [vmem:[#allocation6 + $0x18] sm:$0xff] %vm967, %v822
        %972 = vst.msk [vmem:[#allocation6 + $0x20] sm:$0xff] %vm967, %v834
        %973 = vst.msk [vmem:[#allocation6 + $0x28] sm:$0xff] %vm967, %v846
        %974 = vst.msk [vmem:[#allocation6 + $0x30] sm:$0xff] %vm967, %v858
        %975 = vst.msk [vmem:[#allocation6 + $0x38] sm:$0xff] %vm967, %v870
        %976 = vst.msk [vmem:[#allocation6 + $0x40] sm:$0xff] %vm967, %v882
        %977 = vst.msk [vmem:[#allocation6 + $0x48] sm:$0xff] %vm967, %v894
        %978 = vst.msk [vmem:[#allocation6 + $0x50] sm:$0xff] %vm967, %v906
        %979 = vst.msk [vmem:[#allocation6 + $0x58] sm:$0xff] %vm967, %v918
        %980 = vst.msk [vmem:[#allocation6 + $0x60] sm:$0xff] %vm967, %v930
        %981 = vst.msk [vmem:[#allocation6 + $0x68] sm:$0xff] %vm967, %v942
        %982 = vst.msk [vmem:[#allocation6 + $0x70] sm:$0xff] %vm967, %v954
        %983 = vst.msk [vmem:[#allocation6 + $0x78] sm:$0xff] %vm967, %v966
        %v984 = vlaneseq
        %v985 = vshrl.u32 %v984, 7
        %v986 = vadd.s32 %v985, 8
        %v987 = vadd.s32 %v985, 16
        %v988 = vadd.s32 %v985, 24
        %v989 = vadd.s32 %v985, 32
        %v990 = vadd.s32 %v985, 40
        %v991 = vadd.s32 %v985, 48
        %v992 = vadd.s32 %v985, 56
        %v993 = vadd.s32 %v985, 64
        %v994 = vadd.s32 %v985, 72
        %v995 = vadd.s32 %v985, 80
        %v996 = vadd.s32 %v985, 88
        %v997 = vadd.s32 %v985, 96
        %v998 = vadd.s32 %v985, 104
        %v999 = vadd.s32 %v985, 112
        %v1000 = vadd.s32 %v985, 120
        %v1001 = vlaneseq
        %v1002 = vand.u32 %v1001, 127
        %vm1003 = vcmp.eq.s32.totalorder %v985, %v1002
        %vm1004 = vcmp.eq.s32.totalorder %v986, %v1002
        %vm1005 = vcmp.eq.s32.totalorder %v987, %v1002
        %vm1006 = vcmp.eq.s32.totalorder %v988, %v1002
        %vm1007 = vcmp.eq.s32.totalorder %v989, %v1002
        %vm1008 = vcmp.eq.s32.totalorder %v990, %v1002
        %vm1009 = vcmp.eq.s32.totalorder %v991, %v1002
        %vm1010 = vcmp.eq.s32.totalorder %v992, %v1002
        %vm1011 = vcmp.eq.s32.totalorder %v993, %v1002
        %vm1012 = vcmp.eq.s32.totalorder %v994, %v1002
        %vm1013 = vcmp.eq.s32.totalorder %v995, %v1002
        %vm1014 = vcmp.eq.s32.totalorder %v996, %v1002
        %vm1015 = vcmp.eq.s32.totalorder %v997, %v1002
        %vm1016 = vcmp.eq.s32.totalorder %v998, %v1002
        %vm1017 = vcmp.eq.s32.totalorder %v999, %v1002
        %vm1018 = vcmp.eq.s32.totalorder %v1000, %v1002
        %v1019 = vsel %vm1003, inf, %v659
        %v1020 = vsel %vm1004, inf, %v660
        %v1021 = vsel %vm1005, inf, %v661
        %v1022 = vsel %vm1006, inf, %v662
        %v1023 = vsel %vm1007, inf, %v663
        %v1024 = vsel %vm1008, inf, %v664
        %v1025 = vsel %vm1009, inf, %v665
        %v1026 = vsel %vm1010, inf, %v666
        %v1027 = vsel %vm1011, inf, %v667
        %v1028 = vsel %vm1012, inf, %v668
        %v1029 = vsel %vm1013, inf, %v669
        %v1030 = vsel %vm1014, inf, %v670
        %v1031 = vsel %vm1015, inf, %v671
        %v1032 = vsel %vm1016, inf, %v672
        %v1033 = vsel %vm1017, inf, %v673
        %v1034 = vsel %vm1018, inf, %v674
        %1035 = vmin.xlane.f32.xlu0 %v1019
        %v1036 = vpop.xlane.xlu0 %1035
        %1037 = vmin.xlane.f32.xlu0 %v1020
        %v1038 = vpop.xlane.xlu0 %1037
        %1039 = vmin.xlane.f32.xlu0 %v1021
        %v1040 = vpop.xlane.xlu0 %1039
        %1041 = vmin.xlane.f32.xlu0 %v1022
        %v1042 = vpop.xlane.xlu0 %1041
        %1043 = vmin.xlane.f32.xlu0 %v1023
        %v1044 = vpop.xlane.xlu0 %1043
        %1045 = vmin.xlane.f32.xlu0 %v1024
        %v1046 = vpop.xlane.xlu0 %1045
        %1047 = vmin.xlane.f32.xlu0 %v1025
        %v1048 = vpop.xlane.xlu0 %1047
        %1049 = vmin.xlane.f32.xlu0 %v1026
        %v1050 = vpop.xlane.xlu0 %1049
        %1051 = vmin.xlane.f32.xlu0 %v1027
        %v1052 = vpop.xlane.xlu0 %1051
        %1053 = vmin.xlane.f32.xlu0 %v1028
        %v1054 = vpop.xlane.xlu0 %1053
        %1055 = vmin.xlane.f32.xlu0 %v1029
        %v1056 = vpop.xlane.xlu0 %1055
        %1057 = vmin.xlane.f32.xlu0 %v1030
        %v1058 = vpop.xlane.xlu0 %1057
        %1059 = vmin.xlane.f32.xlu0 %v1031
        %v1060 = vpop.xlane.xlu0 %1059
        %1061 = vmin.xlane.f32.xlu0 %v1032
        %v1062 = vpop.xlane.xlu0 %1061
        %1063 = vmin.xlane.f32.xlu0 %v1033
        %v1064 = vpop.xlane.xlu0 %1063
        %1065 = vmin.xlane.f32.xlu0 %v1034
        %v1066 = vpop.xlane.xlu0 %1065
        %vm1067 = vcmp.le.f32.partialorder %v1019, %v1036
        %vm1068 = vcmp.le.f32.partialorder %v1020, %v1038
        %vm1069 = vcmp.le.f32.partialorder %v1021, %v1040
        %vm1070 = vcmp.le.f32.partialorder %v1022, %v1042
        %vm1071 = vcmp.le.f32.partialorder %v1023, %v1044
        %vm1072 = vcmp.le.f32.partialorder %v1024, %v1046
        %vm1073 = vcmp.le.f32.partialorder %v1025, %v1048
        %vm1074 = vcmp.le.f32.partialorder %v1026, %v1050
        %vm1075 = vcmp.le.f32.partialorder %v1027, %v1052
        %vm1076 = vcmp.le.f32.partialorder %v1028, %v1054
        %vm1077 = vcmp.le.f32.partialorder %v1029, %v1056
        %vm1078 = vcmp.le.f32.partialorder %v1030, %v1058
        %vm1079 = vcmp.le.f32.partialorder %v1031, %v1060
        %vm1080 = vcmp.le.f32.partialorder %v1032, %v1062
        %vm1081 = vcmp.le.f32.partialorder %v1033, %v1064
        %vm1082 = vcmp.le.f32.partialorder %v1034, %v1066
        %v1083 = vld [vmem:[%s256] sm:$0x1]
        %v1085 = vperm.slane %v1083, 0
        %v1087 = vsel %vm1067, %v1085, inf
        %v1088 = vsel %vm1068, %v1085, inf
        %v1089 = vsel %vm1069, %v1085, inf
        %v1090 = vsel %vm1070, %v1085, inf
        %v1091 = vsel %vm1071, %v1085, inf
        %v1092 = vsel %vm1072, %v1085, inf
        %v1093 = vsel %vm1073, %v1085, inf
        %v1094 = vsel %vm1074, %v1085, inf
        %v1095 = vsel %vm1075, %v1085, inf
        %v1096 = vsel %vm1076, %v1085, inf
        %v1097 = vsel %vm1077, %v1085, inf
        %v1098 = vsel %vm1078, %v1085, inf
        %v1099 = vsel %vm1079, %v1085, inf
        %v1100 = vsel %vm1080, %v1085, inf
        %v1101 = vsel %vm1081, %v1085, inf
        %v1102 = vsel %vm1082, %v1085, inf
        %1103 = vmin.xlane.f32.xlu0 %v1087
        %v1104 = vpop.xlane.xlu0 %1103
        %1105 = vmin.xlane.f32.xlu0 %v1088
        %v1106 = vpop.xlane.xlu0 %1105
        %1107 = vmin.xlane.f32.xlu0 %v1089
        %v1108 = vpop.xlane.xlu0 %1107
        %1109 = vmin.xlane.f32.xlu0 %v1090
        %v1110 = vpop.xlane.xlu0 %1109
        %1111 = vmin.xlane.f32.xlu0 %v1091
        %v1112 = vpop.xlane.xlu0 %1111
        %1113 = vmin.xlane.f32.xlu0 %v1092
        %v1114 = vpop.xlane.xlu0 %1113
        %1115 = vmin.xlane.f32.xlu0 %v1093
        %v1116 = vpop.xlane.xlu0 %1115
        %1117 = vmin.xlane.f32.xlu0 %v1094
        %v1118 = vpop.xlane.xlu0 %1117
        %1119 = vmin.xlane.f32.xlu0 %v1095
        %v1120 = vpop.xlane.xlu0 %1119
        %1121 = vmin.xlane.f32.xlu0 %v1096
        %v1122 = vpop.xlane.xlu0 %1121
        %1123 = vmin.xlane.f32.xlu0 %v1097
        %v1124 = vpop.xlane.xlu0 %1123
        %1125 = vmin.xlane.f32.xlu0 %v1098
        %v1126 = vpop.xlane.xlu0 %1125
        %1127 = vmin.xlane.f32.xlu0 %v1099
        %v1128 = vpop.xlane.xlu0 %1127
        %1129 = vmin.xlane.f32.xlu0 %v1100
        %v1130 = vpop.xlane.xlu0 %1129
        %1131 = vmin.xlane.f32.xlu0 %v1101
        %v1132 = vpop.xlane.xlu0 %1131
        %1133 = vmin.xlane.f32.xlu0 %v1102
        %v1134 = vpop.xlane.xlu0 %1133
        %v1135 = vld [vmem:[#allocation2] sm:$0xff]
        %v1136 = vld [vmem:[#allocation2 + $0x8] sm:$0xff]
        %v1137 = vld [vmem:[#allocation2 + $0x10] sm:$0xff]
        %v1138 = vld [vmem:[#allocation2 + $0x18] sm:$0xff]
        %v1139 = vld [vmem:[#allocation2 + $0x20] sm:$0xff]
        %v1140 = vld [vmem:[#allocation2 + $0x28] sm:$0xff]
        %v1141 = vld [vmem:[#allocation2 + $0x30] sm:$0xff]
        %v1142 = vld [vmem:[#allocation2 + $0x38] sm:$0xff]
        %v1143 = vld [vmem:[#allocation2 + $0x40] sm:$0xff]
        %v1144 = vld [vmem:[#allocation2 + $0x48] sm:$0xff]
        %v1145 = vld [vmem:[#allocation2 + $0x50] sm:$0xff]
        %v1146 = vld [vmem:[#allocation2 + $0x58] sm:$0xff]
        %v1147 = vld [vmem:[#allocation2 + $0x60] sm:$0xff]
        %v1148 = vld [vmem:[#allocation2 + $0x68] sm:$0xff]
        %v1149 = vld [vmem:[#allocation2 + $0x70] sm:$0xff]
        %v1150 = vld [vmem:[#allocation2 + $0x78] sm:$0xff]
        %vm1151 = vcmp.lt.f32.partialorder %v1036, %v1135
        %vm1152 = vcmp.lt.f32.partialorder %v1038, %v1136
        %vm1153 = vcmp.lt.f32.partialorder %v1040, %v1137
        %vm1154 = vcmp.lt.f32.partialorder %v1042, %v1138
        %vm1155 = vcmp.lt.f32.partialorder %v1044, %v1139
        %vm1156 = vcmp.lt.f32.partialorder %v1046, %v1140
        %vm1157 = vcmp.lt.f32.partialorder %v1048, %v1141
        %vm1158 = vcmp.lt.f32.partialorder %v1050, %v1142
        %vm1159 = vcmp.lt.f32.partialorder %v1052, %v1143
        %vm1160 = vcmp.lt.f32.partialorder %v1054, %v1144
        %vm1161 = vcmp.lt.f32.partialorder %v1056, %v1145
        %vm1162 = vcmp.lt.f32.partialorder %v1058, %v1146
        %vm1163 = vcmp.lt.f32.partialorder %v1060, %v1147
        %vm1164 = vcmp.lt.f32.partialorder %v1062, %v1148
        %vm1165 = vcmp.lt.f32.partialorder %v1064, %v1149
        %vm1166 = vcmp.lt.f32.partialorder %v1066, %v1150
        %v1167 = vsel %vm1151, %v1036, %v1135
        %v1168 = vsel %vm1152, %v1038, %v1136
        %v1169 = vsel %vm1153, %v1040, %v1137
        %v1170 = vsel %vm1154, %v1042, %v1138
        %v1171 = vsel %vm1155, %v1044, %v1139
        %v1172 = vsel %vm1156, %v1046, %v1140
        %v1173 = vsel %vm1157, %v1048, %v1141
        %v1174 = vsel %vm1158, %v1050, %v1142
        %v1175 = vsel %vm1159, %v1052, %v1143
        %v1176 = vsel %vm1160, %v1054, %v1144
        %v1177 = vsel %vm1161, %v1056, %v1145
        %v1178 = vsel %vm1162, %v1058, %v1146
        %v1179 = vsel %vm1163, %v1060, %v1147
        %v1180 = vsel %vm1164, %v1062, %v1148
        %v1181 = vsel %vm1165, %v1064, %v1149
        %v1182 = vsel %vm1166, %v1066, %v1150
        %1183 = vst.msk [vmem:[#allocation2] sm:$0xff] %vm967, %v1167
        %1184 = vst.msk [vmem:[#allocation2 + $0x8] sm:$0xff] %vm967, %v1168
        %1185 = vst.msk [vmem:[#allocation2 + $0x10] sm:$0xff] %vm967, %v1169
        %1186 = vst.msk [vmem:[#allocation2 + $0x18] sm:$0xff] %vm967, %v1170
        %1187 = vst.msk [vmem:[#allocation2 + $0x20] sm:$0xff] %vm967, %v1171
        %1188 = vst.msk [vmem:[#allocation2 + $0x28] sm:$0xff] %vm967, %v1172
        %1189 = vst.msk [vmem:[#allocation2 + $0x30] sm:$0xff] %vm967, %v1173
        %1190 = vst.msk [vmem:[#allocation2 + $0x38] sm:$0xff] %vm967, %v1174
        %1191 = vst.msk [vmem:[#allocation2 + $0x40] sm:$0xff] %vm967, %v1175
        %1192 = vst.msk [vmem:[#allocation2 + $0x48] sm:$0xff] %vm967, %v1176
        %1193 = vst.msk [vmem:[#allocation2 + $0x50] sm:$0xff] %vm967, %v1177
        %1194 = vst.msk [vmem:[#allocation2 + $0x58] sm:$0xff] %vm967, %v1178
        %1195 = vst.msk [vmem:[#allocation2 + $0x60] sm:$0xff] %vm967, %v1179
        %1196 = vst.msk [vmem:[#allocation2 + $0x68] sm:$0xff] %vm967, %v1180
        %1197 = vst.msk [vmem:[#allocation2 + $0x70] sm:$0xff] %vm967, %v1181
        %1198 = vst.msk [vmem:[#allocation2 + $0x78] sm:$0xff] %vm967, %v1182
        %v1199 = vld [vmem:[#allocation3] sm:$0xff]
        %v1200 = vld [vmem:[#allocation3 + $0x8] sm:$0xff]
        %v1201 = vld [vmem:[#allocation3 + $0x10] sm:$0xff]
        %v1202 = vld [vmem:[#allocation3 + $0x18] sm:$0xff]
        %v1203 = vld [vmem:[#allocation3 + $0x20] sm:$0xff]
        %v1204 = vld [vmem:[#allocation3 + $0x28] sm:$0xff]
        %v1205 = vld [vmem:[#allocation3 + $0x30] sm:$0xff]
        %v1206 = vld [vmem:[#allocation3 + $0x38] sm:$0xff]
        %v1207 = vld [vmem:[#allocation3 + $0x40] sm:$0xff]
        %v1208 = vld [vmem:[#allocation3 + $0x48] sm:$0xff]
        %v1209 = vld [vmem:[#allocation3 + $0x50] sm:$0xff]
        %v1210 = vld [vmem:[#allocation3 + $0x58] sm:$0xff]
        %v1211 = vld [vmem:[#allocation3 + $0x60] sm:$0xff]
        %v1212 = vld [vmem:[#allocation3 + $0x68] sm:$0xff]
        %v1213 = vld [vmem:[#allocation3 + $0x70] sm:$0xff]
        %v1214 = vld [vmem:[#allocation3 + $0x78] sm:$0xff]
        %v1215 = vsel %vm1151, %v1104, %v1199
        %v1216 = vsel %vm1152, %v1106, %v1200
        %v1217 = vsel %vm1153, %v1108, %v1201
        %v1218 = vsel %vm1154, %v1110, %v1202
        %v1219 = vsel %vm1155, %v1112, %v1203
        %v1220 = vsel %vm1156, %v1114, %v1204
        %v1221 = vsel %vm1157, %v1116, %v1205
        %v1222 = vsel %vm1158, %v1118, %v1206
        %v1223 = vsel %vm1159, %v1120, %v1207
        %v1224 = vsel %vm1160, %v1122, %v1208
        %v1225 = vsel %vm1161, %v1124, %v1209
        %v1226 = vsel %vm1162, %v1126, %v1210
        %v1227 = vsel %vm1163, %v1128, %v1211
        %v1228 = vsel %vm1164, %v1130, %v1212
        %v1229 = vsel %vm1165, %v1132, %v1213
        %v1230 = vsel %vm1166, %v1134, %v1214
        %1231 = vst.msk [vmem:[#allocation3] sm:$0xff] %vm967, %v1215
        %1232 = vst.msk [vmem:[#allocation3 + $0x8] sm:$0xff] %vm967, %v1216
        %1233 = vst.msk [vmem:[#allocation3 + $0x10] sm:$0xff] %vm967, %v1217
        %1234 = vst.msk [vmem:[#allocation3 + $0x18] sm:$0xff] %vm967, %v1218
        %1235 = vst.msk [vmem:[#allocation3 + $0x20] sm:$0xff] %vm967, %v1219
        %1236 = vst.msk [vmem:[#allocation3 + $0x28] sm:$0xff] %vm967, %v1220
        %1237 = vst.msk [vmem:[#allocation3 + $0x30] sm:$0xff] %vm967, %v1221
        %1238 = vst.msk [vmem:[#allocation3 + $0x38] sm:$0xff] %vm967, %v1222
        %1239 = vst.msk [vmem:[#allocation3 + $0x40] sm:$0xff] %vm967, %v1223
        %1240 = vst.msk [vmem:[#allocation3 + $0x48] sm:$0xff] %vm967, %v1224
        %1241 = vst.msk [vmem:[#allocation3 + $0x50] sm:$0xff] %vm967, %v1225
        %1242 = vst.msk [vmem:[#allocation3 + $0x58] sm:$0xff] %vm967, %v1226
        %1243 = vst.msk [vmem:[#allocation3 + $0x60] sm:$0xff] %vm967, %v1227
        %1244 = vst.msk [vmem:[#allocation3 + $0x68] sm:$0xff] %vm967, %v1228
        %1245 = vst.msk [vmem:[#allocation3 + $0x70] sm:$0xff] %vm967, %v1229
        %1246 = vst.msk [vmem:[#allocation3 + $0x78] sm:$0xff] %vm967, %v1230
      $region44: #{tpu_custom_call.1} parent=35 // pred_fallthru
        _
      %p1247 = scmp.ne.s32.totalorder %s19, %s20
      // Predicated region
      $region45: #{tpu_custom_call.1} parent=35 // pred_check
        %p1248 = pneg %p1247
      $region46: #{tpu_custom_call.1} parent=35 // pred_check_branch
        %1250 = sbr.rel (%p1248) target = $region48
      $region47: #{tpu_custom_call.1} parent=35 // pred_region
        %1251 = vmin.xlane.f32.xlu0 %v659
        %v1252 = vpop.xlane.xlu0 %1251
        %1253 = vmin.xlane.f32.xlu0 %v660
        %v1254 = vpop.xlane.xlu0 %1253
        %1255 = vmin.xlane.f32.xlu0 %v661
        %v1256 = vpop.xlane.xlu0 %1255
        %1257 = vmin.xlane.f32.xlu0 %v662
        %v1258 = vpop.xlane.xlu0 %1257
        %1259 = vmin.xlane.f32.xlu0 %v663
        %v1260 = vpop.xlane.xlu0 %1259
        %1261 = vmin.xlane.f32.xlu0 %v664
        %v1262 = vpop.xlane.xlu0 %1261
        %1263 = vmin.xlane.f32.xlu0 %v665
        %v1264 = vpop.xlane.xlu0 %1263
        %1265 = vmin.xlane.f32.xlu0 %v666
        %v1266 = vpop.xlane.xlu0 %1265
        %1267 = vmin.xlane.f32.xlu0 %v667
        %v1268 = vpop.xlane.xlu0 %1267
        %1269 = vmin.xlane.f32.xlu0 %v668
        %v1270 = vpop.xlane.xlu0 %1269
        %1271 = vmin.xlane.f32.xlu0 %v669
        %v1272 = vpop.xlane.xlu0 %1271
        %1273 = vmin.xlane.f32.xlu0 %v670
        %v1274 = vpop.xlane.xlu0 %1273
        %1275 = vmin.xlane.f32.xlu0 %v671
        %v1276 = vpop.xlane.xlu0 %1275
        %1277 = vmin.xlane.f32.xlu0 %v672
        %v1278 = vpop.xlane.xlu0 %1277
        %1279 = vmin.xlane.f32.xlu0 %v673
        %v1280 = vpop.xlane.xlu0 %1279
        %1281 = vmin.xlane.f32.xlu0 %v674
        %v1282 = vpop.xlane.xlu0 %1281
        %vm1283 = vcmp.le.f32.partialorder %v659, %v1252
        %vm1284 = vcmp.le.f32.partialorder %v660, %v1254
        %vm1285 = vcmp.le.f32.partialorder %v661, %v1256
        %vm1286 = vcmp.le.f32.partialorder %v662, %v1258
        %vm1287 = vcmp.le.f32.partialorder %v663, %v1260
        %vm1288 = vcmp.le.f32.partialorder %v664, %v1262
        %vm1289 = vcmp.le.f32.partialorder %v665, %v1264
        %vm1290 = vcmp.le.f32.partialorder %v666, %v1266
        %vm1291 = vcmp.le.f32.partialorder %v667, %v1268
        %vm1292 = vcmp.le.f32.partialorder %v668, %v1270
        %vm1293 = vcmp.le.f32.partialorder %v669, %v1272
        %vm1294 = vcmp.le.f32.partialorder %v670, %v1274
        %vm1295 = vcmp.le.f32.partialorder %v671, %v1276
        %vm1296 = vcmp.le.f32.partialorder %v672, %v1278
        %vm1297 = vcmp.le.f32.partialorder %v673, %v1280
        %vm1298 = vcmp.le.f32.partialorder %v674, %v1282
        %v1299 = vld [vmem:[%s256] sm:$0x1]
        %v1301 = vperm.slane %v1299, 0
        %v1303 = vsel %vm1283, %v1301, inf
        %v1304 = vsel %vm1284, %v1301, inf
        %v1305 = vsel %vm1285, %v1301, inf
        %v1306 = vsel %vm1286, %v1301, inf
        %v1307 = vsel %vm1287, %v1301, inf
        %v1308 = vsel %vm1288, %v1301, inf
        %v1309 = vsel %vm1289, %v1301, inf
        %v1310 = vsel %vm1290, %v1301, inf
        %v1311 = vsel %vm1291, %v1301, inf
        %v1312 = vsel %vm1292, %v1301, inf
        %v1313 = vsel %vm1293, %v1301, inf
        %v1314 = vsel %vm1294, %v1301, inf
        %v1315 = vsel %vm1295, %v1301, inf
        %v1316 = vsel %vm1296, %v1301, inf
        %v1317 = vsel %vm1297, %v1301, inf
        %v1318 = vsel %vm1298, %v1301, inf
        %1319 = vmin.xlane.f32.xlu0 %v1303
        %v1320 = vpop.xlane.xlu0 %1319
        %1321 = vmin.xlane.f32.xlu0 %v1304
        %v1322 = vpop.xlane.xlu0 %1321
        %1323 = vmin.xlane.f32.xlu0 %v1305
        %v1324 = vpop.xlane.xlu0 %1323
        %1325 = vmin.xlane.f32.xlu0 %v1306
        %v1326 = vpop.xlane.xlu0 %1325
        %1327 = vmin.xlane.f32.xlu0 %v1307
        %v1328 = vpop.xlane.xlu0 %1327
        %1329 = vmin.xlane.f32.xlu0 %v1308
        %v1330 = vpop.xlane.xlu0 %1329
        %1331 = vmin.xlane.f32.xlu0 %v1309
        %v1332 = vpop.xlane.xlu0 %1331
        %1333 = vmin.xlane.f32.xlu0 %v1310
        %v1334 = vpop.xlane.xlu0 %1333
        %1335 = vmin.xlane.f32.xlu0 %v1311
        %v1336 = vpop.xlane.xlu0 %1335
        %1337 = vmin.xlane.f32.xlu0 %v1312
        %v1338 = vpop.xlane.xlu0 %1337
        %1339 = vmin.xlane.f32.xlu0 %v1313
        %v1340 = vpop.xlane.xlu0 %1339
        %1341 = vmin.xlane.f32.xlu0 %v1314
        %v1342 = vpop.xlane.xlu0 %1341
        %1343 = vmin.xlane.f32.xlu0 %v1315
        %v1344 = vpop.xlane.xlu0 %1343
        %1345 = vmin.xlane.f32.xlu0 %v1316
        %v1346 = vpop.xlane.xlu0 %1345
        %1347 = vmin.xlane.f32.xlu0 %v1317
        %v1348 = vpop.xlane.xlu0 %1347
        %1349 = vmin.xlane.f32.xlu0 %v1318
        %v1350 = vpop.xlane.xlu0 %1349
        %v1351 = vld [vmem:[#allocation2] sm:$0xff]
        %v1352 = vld [vmem:[#allocation2 + $0x8] sm:$0xff]
        %v1353 = vld [vmem:[#allocation2 + $0x10] sm:$0xff]
        %v1354 = vld [vmem:[#allocation2 + $0x18] sm:$0xff]
        %v1355 = vld [vmem:[#allocation2 + $0x20] sm:$0xff]
        %v1356 = vld [vmem:[#allocation2 + $0x28] sm:$0xff]
        %v1357 = vld [vmem:[#allocation2 + $0x30] sm:$0xff]
        %v1358 = vld [vmem:[#allocation2 + $0x38] sm:$0xff]
        %v1359 = vld [vmem:[#allocation2 + $0x40] sm:$0xff]
        %v1360 = vld [vmem:[#allocation2 + $0x48] sm:$0xff]
        %v1361 = vld [vmem:[#allocation2 + $0x50] sm:$0xff]
        %v1362 = vld [vmem:[#allocation2 + $0x58] sm:$0xff]
        %v1363 = vld [vmem:[#allocation2 + $0x60] sm:$0xff]
        %v1364 = vld [vmem:[#allocation2 + $0x68] sm:$0xff]
        %v1365 = vld [vmem:[#allocation2 + $0x70] sm:$0xff]
        %v1366 = vld [vmem:[#allocation2 + $0x78] sm:$0xff]
        %vm1367 = vcmp.lt.f32.partialorder %v1252, %v1351
        %vm1368 = vcmp.lt.f32.partialorder %v1254, %v1352
        %vm1369 = vcmp.lt.f32.partialorder %v1256, %v1353
        %vm1370 = vcmp.lt.f32.partialorder %v1258, %v1354
        %vm1371 = vcmp.lt.f32.partialorder %v1260, %v1355
        %vm1372 = vcmp.lt.f32.partialorder %v1262, %v1356
        %vm1373 = vcmp.lt.f32.partialorder %v1264, %v1357
        %vm1374 = vcmp.lt.f32.partialorder %v1266, %v1358
        %vm1375 = vcmp.lt.f32.partialorder %v1268, %v1359
        %vm1376 = vcmp.lt.f32.partialorder %v1270, %v1360
        %vm1377 = vcmp.lt.f32.partialorder %v1272, %v1361
        %vm1378 = vcmp.lt.f32.partialorder %v1274, %v1362
        %vm1379 = vcmp.lt.f32.partialorder %v1276, %v1363
        %vm1380 = vcmp.lt.f32.partialorder %v1278, %v1364
        %vm1381 = vcmp.lt.f32.partialorder %v1280, %v1365
        %vm1382 = vcmp.lt.f32.partialorder %v1282, %v1366
        %v1383 = vsel %vm1367, %v1252, %v1351
        %v1384 = vsel %vm1368, %v1254, %v1352
        %v1385 = vsel %vm1369, %v1256, %v1353
        %v1386 = vsel %vm1370, %v1258, %v1354
        %v1387 = vsel %vm1371, %v1260, %v1355
        %v1388 = vsel %vm1372, %v1262, %v1356
        %v1389 = vsel %vm1373, %v1264, %v1357
        %v1390 = vsel %vm1374, %v1266, %v1358
        %v1391 = vsel %vm1375, %v1268, %v1359
        %v1392 = vsel %vm1376, %v1270, %v1360
        %v1393 = vsel %vm1377, %v1272, %v1361
        %v1394 = vsel %vm1378, %v1274, %v1362
        %v1395 = vsel %vm1379, %v1276, %v1363
        %v1396 = vsel %vm1380, %v1278, %v1364
        %v1397 = vsel %vm1381, %v1280, %v1365
        %v1398 = vsel %vm1382, %v1282, %v1366
        %vm1399 = vcmask 7168
        %1400 = vst.msk [vmem:[#allocation2] sm:$0xff] %vm1399, %v1383
        %1401 = vst.msk [vmem:[#allocation2 + $0x8] sm:$0xff] %vm1399, %v1384
        %1402 = vst.msk [vmem:[#allocation2 + $0x10] sm:$0xff] %vm1399, %v1385
        %1403 = vst.msk [vmem:[#allocation2 + $0x18] sm:$0xff] %vm1399, %v1386
        %1404 = vst.msk [vmem:[#allocation2 + $0x20] sm:$0xff] %vm1399, %v1387
        %1405 = vst.msk [vmem:[#allocation2 + $0x28] sm:$0xff] %vm1399, %v1388
        %1406 = vst.msk [vmem:[#allocation2 + $0x30] sm:$0xff] %vm1399, %v1389
        %1407 = vst.msk [vmem:[#allocation2 + $0x38] sm:$0xff] %vm1399, %v1390
        %1408 = vst.msk [vmem:[#allocation2 + $0x40] sm:$0xff] %vm1399, %v1391
        %1409 = vst.msk [vmem:[#allocation2 + $0x48] sm:$0xff] %vm1399, %v1392
        %1410 = vst.msk [vmem:[#allocation2 + $0x50] sm:$0xff] %vm1399, %v1393
        %1411 = vst.msk [vmem:[#allocation2 + $0x58] sm:$0xff] %vm1399, %v1394
        %1412 = vst.msk [vmem:[#allocation2 + $0x60] sm:$0xff] %vm1399, %v1395
        %1413 = vst.msk [vmem:[#allocation2 + $0x68] sm:$0xff] %vm1399, %v1396
        %1414 = vst.msk [vmem:[#allocation2 + $0x70] sm:$0xff] %vm1399, %v1397
        %1415 = vst.msk [vmem:[#allocation2 + $0x78] sm:$0xff] %vm1399, %v1398
        %v1416 = vld [vmem:[#allocation3] sm:$0xff]
        %v1417 = vld [vmem:[#allocation3 + $0x8] sm:$0xff]
        %v1418 = vld [vmem:[#allocation3 + $0x10] sm:$0xff]
        %v1419 = vld [vmem:[#allocation3 + $0x18] sm:$0xff]
        %v1420 = vld [vmem:[#allocation3 + $0x20] sm:$0xff]
        %v1421 = vld [vmem:[#allocation3 + $0x28] sm:$0xff]
        %v1422 = vld [vmem:[#allocation3 + $0x30] sm:$0xff]
        %v1423 = vld [vmem:[#allocation3 + $0x38] sm:$0xff]
        %v1424 = vld [vmem:[#allocation3 + $0x40] sm:$0xff]
        %v1425 = vld [vmem:[#allocation3 + $0x48] sm:$0xff]
        %v1426 = vld [vmem:[#allocation3 + $0x50] sm:$0xff]
        %v1427 = vld [vmem:[#allocation3 + $0x58] sm:$0xff]
        %v1428 = vld [vmem:[#allocation3 + $0x60] sm:$0xff]
        %v1429 = vld [vmem:[#allocation3 + $0x68] sm:$0xff]
        %v1430 = vld [vmem:[#allocation3 + $0x70] sm:$0xff]
        %v1431 = vld [vmem:[#allocation3 + $0x78] sm:$0xff]
        %v1432 = vsel %vm1367, %v1320, %v1416
        %v1433 = vsel %vm1368, %v1322, %v1417
        %v1434 = vsel %vm1369, %v1324, %v1418
        %v1435 = vsel %vm1370, %v1326, %v1419
        %v1436 = vsel %vm1371, %v1328, %v1420
        %v1437 = vsel %vm1372, %v1330, %v1421
        %v1438 = vsel %vm1373, %v1332, %v1422
        %v1439 = vsel %vm1374, %v1334, %v1423
        %v1440 = vsel %vm1375, %v1336, %v1424
        %v1441 = vsel %vm1376, %v1338, %v1425
        %v1442 = vsel %vm1377, %v1340, %v1426
        %v1443 = vsel %vm1378, %v1342, %v1427
        %v1444 = vsel %vm1379, %v1344, %v1428
        %v1445 = vsel %vm1380, %v1346, %v1429
        %v1446 = vsel %vm1381, %v1348, %v1430
        %v1447 = vsel %vm1382, %v1350, %v1431
        %1448 = vst.msk [vmem:[#allocation3] sm:$0xff] %vm1399, %v1432
        %1449 = vst.msk [vmem:[#allocation3 + $0x8] sm:$0xff] %vm1399, %v1433
        %1450 = vst.msk [vmem:[#allocation3 + $0x10] sm:$0xff] %vm1399, %v1434
        %1451 = vst.msk [vmem:[#allocation3 + $0x18] sm:$0xff] %vm1399, %v1435
        %1452 = vst.msk [vmem:[#allocation3 + $0x20] sm:$0xff] %vm1399, %v1436
        %1453 = vst.msk [vmem:[#allocation3 + $0x28] sm:$0xff] %vm1399, %v1437
        %1454 = vst.msk [vmem:[#allocation3 + $0x30] sm:$0xff] %vm1399, %v1438
        %1455 = vst.msk [vmem:[#allocation3 + $0x38] sm:$0xff] %vm1399, %v1439
        %1456 = vst.msk [vmem:[#allocation3 + $0x40] sm:$0xff] %vm1399, %v1440
        %1457 = vst.msk [vmem:[#allocation3 + $0x48] sm:$0xff] %vm1399, %v1441
        %1458 = vst.msk [vmem:[#allocation3 + $0x50] sm:$0xff] %vm1399, %v1442
        %1459 = vst.msk [vmem:[#allocation3 + $0x58] sm:$0xff] %vm1399, %v1443
        %1460 = vst.msk [vmem:[#allocation3 + $0x60] sm:$0xff] %vm1399, %v1444
        %1461 = vst.msk [vmem:[#allocation3 + $0x68] sm:$0xff] %vm1399, %v1445
        %1462 = vst.msk [vmem:[#allocation3 + $0x70] sm:$0xff] %vm1399, %v1446
        %1463 = vst.msk [vmem:[#allocation3 + $0x78] sm:$0xff] %vm1399, %v1447
      $region48: #{tpu_custom_call.1} parent=35 // pred_fallthru
        _
      %p1464 = scmp.eq.s32.totalorder %s20, 1
      // Predicated region
      $region49: #{tpu_custom_call.1} parent=35 // pred_check
        %p1465 = pneg %p1464
      $region50: #{tpu_custom_call.1} parent=35 // pred_check_branch
        %1467 = sbr.rel (%p1465) target = $region52
      $region51: #{tpu_custom_call.1} parent=35 // pred_region
        %v1468 = vld [vmem:[#allocation4] sm:$0xff]
        %v1469 = vld [vmem:[#allocation4 + $0x8] sm:$0xff]
        %v1470 = vld [vmem:[#allocation4 + $0x10] sm:$0xff]
        %v1471 = vld [vmem:[#allocation4 + $0x18] sm:$0xff]
        %v1472 = vld [vmem:[#allocation4 + $0x20] sm:$0xff]
        %v1473 = vld [vmem:[#allocation4 + $0x28] sm:$0xff]
        %v1474 = vld [vmem:[#allocation4 + $0x30] sm:$0xff]
        %v1475 = vld [vmem:[#allocation4 + $0x38] sm:$0xff]
        %v1476 = vld [vmem:[#allocation4 + $0x40] sm:$0xff]
        %v1477 = vld [vmem:[#allocation4 + $0x48] sm:$0xff]
        %v1478 = vld [vmem:[#allocation4 + $0x50] sm:$0xff]
        %v1479 = vld [vmem:[#allocation4 + $0x58] sm:$0xff]
        %v1480 = vld [vmem:[#allocation4 + $0x60] sm:$0xff]
        %v1481 = vld [vmem:[#allocation4 + $0x68] sm:$0xff]
        %v1482 = vld [vmem:[#allocation4 + $0x70] sm:$0xff]
        %v1483 = vld [vmem:[#allocation4 + $0x78] sm:$0xff]
        %v1484 = vld [vmem:[#allocation2] sm:$0xff]
        %v1485 = vld [vmem:[#allocation2 + $0x8] sm:$0xff]
        %v1486 = vld [vmem:[#allocation2 + $0x10] sm:$0xff]
        %v1487 = vld [vmem:[#allocation2 + $0x18] sm:$0xff]
        %v1488 = vld [vmem:[#allocation2 + $0x20] sm:$0xff]
        %v1489 = vld [vmem:[#allocation2 + $0x28] sm:$0xff]
        %v1490 = vld [vmem:[#allocation2 + $0x30] sm:$0xff]
        %v1491 = vld [vmem:[#allocation2 + $0x38] sm:$0xff]
        %v1492 = vld [vmem:[#allocation2 + $0x40] sm:$0xff]
        %v1493 = vld [vmem:[#allocation2 + $0x48] sm:$0xff]
        %v1494 = vld [vmem:[#allocation2 + $0x50] sm:$0xff]
        %v1495 = vld [vmem:[#allocation2 + $0x58] sm:$0xff]
        %v1496 = vld [vmem:[#allocation2 + $0x60] sm:$0xff]
        %v1497 = vld [vmem:[#allocation2 + $0x68] sm:$0xff]
        %v1498 = vld [vmem:[#allocation2 + $0x70] sm:$0xff]
        %v1499 = vld [vmem:[#allocation2 + $0x78] sm:$0xff]
        %v1500 = vadd.f32 %v1468, %v1484
        %v1501 = vadd.f32 %v1469, %v1485
        %v1502 = vadd.f32 %v1470, %v1486
        %v1503 = vadd.f32 %v1471, %v1487
        %v1504 = vadd.f32 %v1472, %v1488
        %v1505 = vadd.f32 %v1473, %v1489
        %v1506 = vadd.f32 %v1474, %v1490
        %v1507 = vadd.f32 %v1475, %v1491
        %v1508 = vadd.f32 %v1476, %v1492
        %v1509 = vadd.f32 %v1477, %v1493
        %v1510 = vadd.f32 %v1478, %v1494
        %v1511 = vadd.f32 %v1479, %v1495
        %v1512 = vadd.f32 %v1480, %v1496
        %v1513 = vadd.f32 %v1481, %v1497
        %v1514 = vadd.f32 %v1482, %v1498
        %v1515 = vadd.f32 %v1483, %v1499
        %v1516 = vld [vmem:[#allocation5] sm:$0xff]
        %v1517 = vld [vmem:[#allocation5 + $0x8] sm:$0xff]
        %v1518 = vld [vmem:[#allocation5 + $0x10] sm:$0xff]
        %v1519 = vld [vmem:[#allocation5 + $0x18] sm:$0xff]
        %v1520 = vld [vmem:[#allocation5 + $0x20] sm:$0xff]
        %v1521 = vld [vmem:[#allocation5 + $0x28] sm:$0xff]
        %v1522 = vld [vmem:[#allocation5 + $0x30] sm:$0xff]
        %v1523 = vld [vmem:[#allocation5 + $0x38] sm:$0xff]
        %v1524 = vld [vmem:[#allocation5 + $0x40] sm:$0xff]
        %v1525 = vld [vmem:[#allocation5 + $0x48] sm:$0xff]
        %v1526 = vld [vmem:[#allocation5 + $0x50] sm:$0xff]
        %v1527 = vld [vmem:[#allocation5 + $0x58] sm:$0xff]
        %v1528 = vld [vmem:[#allocation5 + $0x60] sm:$0xff]
        %v1529 = vld [vmem:[#allocation5 + $0x68] sm:$0xff]
        %v1530 = vld [vmem:[#allocation5 + $0x70] sm:$0xff]
        %v1531 = vld [vmem:[#allocation5 + $0x78] sm:$0xff]
        %v1532 = vld [vmem:[#allocation3] sm:$0xff]
        %v1533 = vld [vmem:[#allocation3 + $0x8] sm:$0xff]
        %v1534 = vld [vmem:[#allocation3 + $0x10] sm:$0xff]
        %v1535 = vld [vmem:[#allocation3 + $0x18] sm:$0xff]
        %v1536 = vld [vmem:[#allocation3 + $0x20] sm:$0xff]
        %v1537 = vld [vmem:[#allocation3 + $0x28] sm:$0xff]
        %v1538 = vld [vmem:[#allocation3 + $0x30] sm:$0xff]
        %v1539 = vld [vmem:[#allocation3 + $0x38] sm:$0xff]
        %v1540 = vld [vmem:[#allocation3 + $0x40] sm:$0xff]
        %v1541 = vld [vmem:[#allocation3 + $0x48] sm:$0xff]
        %v1542 = vld [vmem:[#allocation3 + $0x50] sm:$0xff]
        %v1543 = vld [vmem:[#allocation3 + $0x58] sm:$0xff]
        %v1544 = vld [vmem:[#allocation3 + $0x60] sm:$0xff]
        %v1545 = vld [vmem:[#allocation3 + $0x68] sm:$0xff]
        %v1546 = vld [vmem:[#allocation3 + $0x70] sm:$0xff]
        %v1547 = vld [vmem:[#allocation3 + $0x78] sm:$0xff]
        %v1548 = vsub.f32 %v1516, %v1532
        %v1549 = vsub.f32 %v1517, %v1533
        %v1550 = vsub.f32 %v1518, %v1534
        %v1551 = vsub.f32 %v1519, %v1535
        %v1552 = vsub.f32 %v1520, %v1536
        %v1553 = vsub.f32 %v1521, %v1537
        %v1554 = vsub.f32 %v1522, %v1538
        %v1555 = vsub.f32 %v1523, %v1539
        %v1556 = vsub.f32 %v1524, %v1540
        %v1557 = vsub.f32 %v1525, %v1541
        %v1558 = vsub.f32 %v1526, %v1542
        %v1559 = vsub.f32 %v1527, %v1543
        %v1560 = vsub.f32 %v1528, %v1544
        %v1561 = vsub.f32 %v1529, %v1545
        %v1562 = vsub.f32 %v1530, %v1546
        %v1563 = vsub.f32 %v1531, %v1547
        %v1564 = vmul.f32 %v1548, 2e-06
        %v1565 = vmul.f32 %v1549, 2e-06
        %v1566 = vmul.f32 %v1550, 2e-06
        %v1567 = vmul.f32 %v1551, 2e-06
        %v1568 = vmul.f32 %v1552, 2e-06
        %v1569 = vmul.f32 %v1553, 2e-06
        %v1570 = vmul.f32 %v1554, 2e-06
        %v1571 = vmul.f32 %v1555, 2e-06
        %v1572 = vmul.f32 %v1556, 2e-06
        %v1573 = vmul.f32 %v1557, 2e-06
        %v1574 = vmul.f32 %v1558, 2e-06
        %v1575 = vmul.f32 %v1559, 2e-06
        %v1576 = vmul.f32 %v1560, 2e-06
        %v1577 = vmul.f32 %v1561, 2e-06
        %v1578 = vmul.f32 %v1562, 2e-06
        %v1579 = vmul.f32 %v1563, 2e-06
        %v1580 = vadd.f32 %v1500, %v1564
        %v1581 = vadd.f32 %v1501, %v1565
        %v1582 = vadd.f32 %v1502, %v1566
        %v1583 = vadd.f32 %v1503, %v1567
        %v1584 = vadd.f32 %v1504, %v1568
        %v1585 = vadd.f32 %v1505, %v1569
        %v1586 = vadd.f32 %v1506, %v1570
        %v1587 = vadd.f32 %v1507, %v1571
        %v1588 = vadd.f32 %v1508, %v1572
        %v1589 = vadd.f32 %v1509, %v1573
        %v1590 = vadd.f32 %v1510, %v1574
        %v1591 = vadd.f32 %v1511, %v1575
        %v1592 = vadd.f32 %v1512, %v1576
        %v1593 = vadd.f32 %v1513, %v1577
        %v1594 = vadd.f32 %v1514, %v1578
        %v1595 = vadd.f32 %v1515, %v1579
        %v1596 = vadd.f32 %v1580, 6.4e-11
        %v1597 = vadd.f32 %v1581, 6.4e-11
        %v1598 = vadd.f32 %v1582, 6.4e-11
        %v1599 = vadd.f32 %v1583, 6.4e-11
        %v1600 = vadd.f32 %v1584, 6.4e-11
        %v1601 = vadd.f32 %v1585, 6.4e-11
        %v1602 = vadd.f32 %v1586, 6.4e-11
        %v1603 = vadd.f32 %v1587, 6.4e-11
        %v1604 = vadd.f32 %v1588, 6.4e-11
        %v1605 = vadd.f32 %v1589, 6.4e-11
        %v1606 = vadd.f32 %v1590, 6.4e-11
        %v1607 = vadd.f32 %v1591, 6.4e-11
        %v1608 = vadd.f32 %v1592, 6.4e-11
        %v1609 = vadd.f32 %v1593, 6.4e-11
        %v1610 = vadd.f32 %v1594, 6.4e-11
        %v1611 = vadd.f32 %v1595, 6.4e-11
        %v1612 = vmax.f32 %v1596, 0.0
        %v1613 = vmax.f32 %v1597, 0.0
        %v1614 = vmax.f32 %v1598, 0.0
        %v1615 = vmax.f32 %v1599, 0.0
        %v1616 = vmax.f32 %v1600, 0.0
        %v1617 = vmax.f32 %v1601, 0.0
        %v1618 = vmax.f32 %v1602, 0.0
        %v1619 = vmax.f32 %v1603, 0.0
        %v1620 = vmax.f32 %v1604, 0.0
        %v1621 = vmax.f32 %v1605, 0.0
        %v1622 = vmax.f32 %v1606, 0.0
        %v1623 = vmax.f32 %v1607, 0.0
        %v1624 = vmax.f32 %v1608, 0.0
        %v1625 = vmax.f32 %v1609, 0.0
        %v1626 = vmax.f32 %v1610, 0.0
        %v1627 = vmax.f32 %v1611, 0.0
        %v1628 = vrsqrt.pop %v1612
        %v1629 = vmul.f32 %v1628, %v1612
        %v1630 = vmul.f32 %v1629, %v1628
        %v1631 = vmul.f32 0.5, %v1630
        %v1632 = vsub.f32 1.5, %v1631
        %v1633 = vmul.f32 %v1628, %v1632
        %v1634 = vmul.f32 %v1612, %v1633
        %vm1635 = vcmp.eq.f32.partialorder %v1612, inf
        %v1636 = vsel %vm1635, %v1612, %v1634
        %vm1637 = vcmp.eq.f32.partialorder %v1612, 0.0
        %v1638 = vand.u32 %v1612, 2147483648
        %v1639 = vsel %vm1637, %v1638, %v1636
        %v1640 = vrsqrt.pop %v1613
        %v1641 = vmul.f32 %v1640, %v1613
        %v1642 = vmul.f32 %v1641, %v1640
        %v1643 = vmul.f32 0.5, %v1642
        %v1644 = vsub.f32 1.5, %v1643
        %v1645 = vmul.f32 %v1640, %v1644
        %v1646 = vmul.f32 %v1613, %v1645
        %vm1647 = vcmp.eq.f32.partialorder %v1613, inf
        %v1648 = vsel %vm1647, %v1613, %v1646
        %vm1649 = vcmp.eq.f32.partialorder %v1613, 0.0
        %v1650 = vand.u32 %v1613, 2147483648
        %v1651 = vsel %vm1649, %v1650, %v1648
        %v1652 = vrsqrt.pop %v1614
        %v1653 = vmul.f32 %v1652, %v1614
        %v1654 = vmul.f32 %v1653, %v1652
        %v1655 = vmul.f32 0.5, %v1654
        %v1656 = vsub.f32 1.5, %v1655
        %v1657 = vmul.f32 %v1652, %v1656
        %v1658 = vmul.f32 %v1614, %v1657
        %vm1659 = vcmp.eq.f32.partialorder %v1614, inf
        %v1660 = vsel %vm1659, %v1614, %v1658
        %vm1661 = vcmp.eq.f32.partialorder %v1614, 0.0
        %v1662 = vand.u32 %v1614, 2147483648
        %v1663 = vsel %vm1661, %v1662, %v1660
        %v1664 = vrsqrt.pop %v1615
        %v1665 = vmul.f32 %v1664, %v1615
        %v1666 = vmul.f32 %v1665, %v1664
        %v1667 = vmul.f32 0.5, %v1666
        %v1668 = vsub.f32 1.5, %v1667
        %v1669 = vmul.f32 %v1664, %v1668
        %v1670 = vmul.f32 %v1615, %v1669
        %vm1671 = vcmp.eq.f32.partialorder %v1615, inf
        %v1672 = vsel %vm1671, %v1615, %v1670
        %vm1673 = vcmp.eq.f32.partialorder %v1615, 0.0
        %v1674 = vand.u32 %v1615, 2147483648
        %v1675 = vsel %vm1673, %v1674, %v1672
        %v1676 = vrsqrt.pop %v1616
        %v1677 = vmul.f32 %v1676, %v1616
        %v1678 = vmul.f32 %v1677, %v1676
        %v1679 = vmul.f32 0.5, %v1678
        %v1680 = vsub.f32 1.5, %v1679
        %v1681 = vmul.f32 %v1676, %v1680
        %v1682 = vmul.f32 %v1616, %v1681
        %vm1683 = vcmp.eq.f32.partialorder %v1616, inf
        %v1684 = vsel %vm1683, %v1616, %v1682
        %vm1685 = vcmp.eq.f32.partialorder %v1616, 0.0
        %v1686 = vand.u32 %v1616, 2147483648
        %v1687 = vsel %vm1685, %v1686, %v1684
        %v1688 = vrsqrt.pop %v1617
        %v1689 = vmul.f32 %v1688, %v1617
        %v1690 = vmul.f32 %v1689, %v1688
        %v1691 = vmul.f32 0.5, %v1690
        %v1692 = vsub.f32 1.5, %v1691
        %v1693 = vmul.f32 %v1688, %v1692
        %v1694 = vmul.f32 %v1617, %v1693
        %vm1695 = vcmp.eq.f32.partialorder %v1617, inf
        %v1696 = vsel %vm1695, %v1617, %v1694
        %vm1697 = vcmp.eq.f32.partialorder %v1617, 0.0
        %v1698 = vand.u32 %v1617, 2147483648
        %v1699 = vsel %vm1697, %v1698, %v1696
        %v1700 = vrsqrt.pop %v1618
        %v1701 = vmul.f32 %v1700, %v1618
        %v1702 = vmul.f32 %v1701, %v1700
        %v1703 = vmul.f32 0.5, %v1702
        %v1704 = vsub.f32 1.5, %v1703
        %v1705 = vmul.f32 %v1700, %v1704
        %v1706 = vmul.f32 %v1618, %v1705
        %vm1707 = vcmp.eq.f32.partialorder %v1618, inf
        %v1708 = vsel %vm1707, %v1618, %v1706
        %vm1709 = vcmp.eq.f32.partialorder %v1618, 0.0
        %v1710 = vand.u32 %v1618, 2147483648
        %v1711 = vsel %vm1709, %v1710, %v1708
        %v1712 = vrsqrt.pop %v1619
        %v1713 = vmul.f32 %v1712, %v1619
        %v1714 = vmul.f32 %v1713, %v1712
        %v1715 = vmul.f32 0.5, %v1714
        %v1716 = vsub.f32 1.5, %v1715
        %v1717 = vmul.f32 %v1712, %v1716
        %v1718 = vmul.f32 %v1619, %v1717
        %vm1719 = vcmp.eq.f32.partialorder %v1619, inf
        %v1720 = vsel %vm1719, %v1619, %v1718
        %vm1721 = vcmp.eq.f32.partialorder %v1619, 0.0
        %v1722 = vand.u32 %v1619, 2147483648
        %v1723 = vsel %vm1721, %v1722, %v1720
        %v1724 = vrsqrt.pop %v1620
        %v1725 = vmul.f32 %v1724, %v1620
        %v1726 = vmul.f32 %v1725, %v1724
        %v1727 = vmul.f32 0.5, %v1726
        %v1728 = vsub.f32 1.5, %v1727
        %v1729 = vmul.f32 %v1724, %v1728
        %v1730 = vmul.f32 %v1620, %v1729
        %vm1731 = vcmp.eq.f32.partialorder %v1620, inf
        %v1732 = vsel %vm1731, %v1620, %v1730
        %vm1733 = vcmp.eq.f32.partialorder %v1620, 0.0
        %v1734 = vand.u32 %v1620, 2147483648
        %v1735 = vsel %vm1733, %v1734, %v1732
        %v1736 = vrsqrt.pop %v1621
        %v1737 = vmul.f32 %v1736, %v1621
        %v1738 = vmul.f32 %v1737, %v1736
        %v1739 = vmul.f32 0.5, %v1738
        %v1740 = vsub.f32 1.5, %v1739
        %v1741 = vmul.f32 %v1736, %v1740
        %v1742 = vmul.f32 %v1621, %v1741
        %vm1743 = vcmp.eq.f32.partialorder %v1621, inf
        %v1744 = vsel %vm1743, %v1621, %v1742
        %vm1745 = vcmp.eq.f32.partialorder %v1621, 0.0
        %v1746 = vand.u32 %v1621, 2147483648
        %v1747 = vsel %vm1745, %v1746, %v1744
        %v1748 = vrsqrt.pop %v1622
        %v1749 = vmul.f32 %v1748, %v1622
        %v1750 = vmul.f32 %v1749, %v1748
        %v1751 = vmul.f32 0.5, %v1750
        %v1752 = vsub.f32 1.5, %v1751
        %v1753 = vmul.f32 %v1748, %v1752
        %v1754 = vmul.f32 %v1622, %v1753
        %vm1755 = vcmp.eq.f32.partialorder %v1622, inf
        %v1756 = vsel %vm1755, %v1622, %v1754
        %vm1757 = vcmp.eq.f32.partialorder %v1622, 0.0
        %v1758 = vand.u32 %v1622, 2147483648
        %v1759 = vsel %vm1757, %v1758, %v1756
        %v1760 = vrsqrt.pop %v1623
        %v1761 = vmul.f32 %v1760, %v1623
        %v1762 = vmul.f32 %v1761, %v1760
        %v1763 = vmul.f32 0.5, %v1762
        %v1764 = vsub.f32 1.5, %v1763
        %v1765 = vmul.f32 %v1760, %v1764
        %v1766 = vmul.f32 %v1623, %v1765
        %vm1767 = vcmp.eq.f32.partialorder %v1623, inf
        %v1768 = vsel %vm1767, %v1623, %v1766
        %vm1769 = vcmp.eq.f32.partialorder %v1623, 0.0
        %v1770 = vand.u32 %v1623, 2147483648
        %v1771 = vsel %vm1769, %v1770, %v1768
        %v1772 = vrsqrt.pop %v1624
        %v1773 = vmul.f32 %v1772, %v1624
        %v1774 = vmul.f32 %v1773, %v1772
        %v1775 = vmul.f32 0.5, %v1774
        %v1776 = vsub.f32 1.5, %v1775
        %v1777 = vmul.f32 %v1772, %v1776
        %v1778 = vmul.f32 %v1624, %v1777
        %vm1779 = vcmp.eq.f32.partialorder %v1624, inf
        %v1780 = vsel %vm1779, %v1624, %v1778
        %vm1781 = vcmp.eq.f32.partialorder %v1624, 0.0
        %v1782 = vand.u32 %v1624, 2147483648
        %v1783 = vsel %vm1781, %v1782, %v1780
        %v1784 = vrsqrt.pop %v1625
        %v1785 = vmul.f32 %v1784, %v1625
        %v1786 = vmul.f32 %v1785, %v1784
        %v1787 = vmul.f32 0.5, %v1786
        %v1788 = vsub.f32 1.5, %v1787
        %v1789 = vmul.f32 %v1784, %v1788
        %v1790 = vmul.f32 %v1625, %v1789
        %vm1791 = vcmp.eq.f32.partialorder %v1625, inf
        %v1792 = vsel %vm1791, %v1625, %v1790
        %vm1793 = vcmp.eq.f32.partialorder %v1625, 0.0
        %v1794 = vand.u32 %v1625, 2147483648
        %v1795 = vsel %vm1793, %v1794, %v1792
        %v1796 = vrsqrt.pop %v1626
        %v1797 = vmul.f32 %v1796, %v1626
        %v1798 = vmul.f32 %v1797, %v1796
        %v1799 = vmul.f32 0.5, %v1798
        %v1800 = vsub.f32 1.5, %v1799
        %v1801 = vmul.f32 %v1796, %v1800
        %v1802 = vmul.f32 %v1626, %v1801
        %vm1803 = vcmp.eq.f32.partialorder %v1626, inf
        %v1804 = vsel %vm1803, %v1626, %v1802
        %vm1805 = vcmp.eq.f32.partialorder %v1626, 0.0
        %v1806 = vand.u32 %v1626, 2147483648
        %v1807 = vsel %vm1805, %v1806, %v1804
        %v1808 = vrsqrt.pop %v1627
        %v1809 = vmul.f32 %v1808, %v1627
        %v1810 = vmul.f32 %v1809, %v1808
        %v1811 = vmul.f32 0.5, %v1810
        %v1812 = vsub.f32 1.5, %v1811
        %v1813 = vmul.f32 %v1808, %v1812
        %v1814 = vmul.f32 %v1627, %v1813
        %vm1815 = vcmp.eq.f32.partialorder %v1627, inf
        %v1816 = vsel %vm1815, %v1627, %v1814
        %vm1817 = vcmp.eq.f32.partialorder %v1627, 0.0
        %v1818 = vand.u32 %v1627, 2147483648
        %v1819 = vsel %vm1817, %v1818, %v1816
        %v1820 = vld [vmem:[#allocation6] sm:$0xff]
        %v1821 = vld [vmem:[#allocation6 + $0x8] sm:$0xff]
        %v1822 = vld [vmem:[#allocation6 + $0x10] sm:$0xff]
        %v1823 = vld [vmem:[#allocation6 + $0x18] sm:$0xff]
        %v1824 = vld [vmem:[#allocation6 + $0x20] sm:$0xff]
        %v1825 = vld [vmem:[#allocation6 + $0x28] sm:$0xff]
        %v1826 = vld [vmem:[#allocation6 + $0x30] sm:$0xff]
        %v1827 = vld [vmem:[#allocation6 + $0x38] sm:$0xff]
        %v1828 = vld [vmem:[#allocation6 + $0x40] sm:$0xff]
        %v1829 = vld [vmem:[#allocation6 + $0x48] sm:$0xff]
        %v1830 = vld [vmem:[#allocation6 + $0x50] sm:$0xff]
        %v1831 = vld [vmem:[#allocation6 + $0x58] sm:$0xff]
        %v1832 = vld [vmem:[#allocation6 + $0x60] sm:$0xff]
        %v1833 = vld [vmem:[#allocation6 + $0x68] sm:$0xff]
        %v1834 = vld [vmem:[#allocation6 + $0x70] sm:$0xff]
        %v1835 = vld [vmem:[#allocation6 + $0x78] sm:$0xff]
        %v1836 = vsub.f32 %v1820, %v1639
        %v1837 = vsub.f32 %v1821, %v1651
        %v1838 = vsub.f32 %v1822, %v1663
        %v1839 = vsub.f32 %v1823, %v1675
        %v1840 = vsub.f32 %v1824, %v1687
        %v1841 = vsub.f32 %v1825, %v1699
        %v1842 = vsub.f32 %v1826, %v1711
        %v1843 = vsub.f32 %v1827, %v1723
        %v1844 = vsub.f32 %v1828, %v1735
        %v1845 = vsub.f32 %v1829, %v1747
        %v1846 = vsub.f32 %v1830, %v1759
        %v1847 = vsub.f32 %v1831, %v1771
        %v1848 = vsub.f32 %v1832, %v1783
        %v1849 = vsub.f32 %v1833, %v1795
        %v1850 = vsub.f32 %v1834, %v1807
        %v1851 = vsub.f32 %v1835, %v1819
        %v1852 = vadd.f32 %v1836, 0.2
        %v1853 = vadd.f32 %v1837, 0.2
        %v1854 = vadd.f32 %v1838, 0.2
        %v1855 = vadd.f32 %v1839, 0.2
        %v1856 = vadd.f32 %v1840, 0.2
        %v1857 = vadd.f32 %v1841, 0.2
        %v1858 = vadd.f32 %v1842, 0.2
        %v1859 = vadd.f32 %v1843, 0.2
        %v1860 = vadd.f32 %v1844, 0.2
        %v1861 = vadd.f32 %v1845, 0.2
        %v1862 = vadd.f32 %v1846, 0.2
        %v1863 = vadd.f32 %v1847, 0.2
        %v1864 = vadd.f32 %v1848, 0.2
        %v1865 = vadd.f32 %v1849, 0.2
        %v1866 = vadd.f32 %v1850, 0.2
        %v1867 = vadd.f32 %v1851, 0.2
        %v1868 = vmax.f32 %v1852, 0.0
        %v1869 = vmax.f32 %v1853, 0.0
        %v1870 = vmax.f32 %v1854, 0.0
        %v1871 = vmax.f32 %v1855, 0.0
        %v1872 = vmax.f32 %v1856, 0.0
        %v1873 = vmax.f32 %v1857, 0.0
        %v1874 = vmax.f32 %v1858, 0.0
        %v1875 = vmax.f32 %v1859, 0.0
        %v1876 = vmax.f32 %v1860, 0.0
        %v1877 = vmax.f32 %v1861, 0.0
        %v1878 = vmax.f32 %v1862, 0.0
        %v1879 = vmax.f32 %v1863, 0.0
        %v1880 = vmax.f32 %v1864, 0.0
        %v1881 = vmax.f32 %v1865, 0.0
        %v1882 = vmax.f32 %v1866, 0.0
        %v1883 = vmax.f32 %v1867, 0.0
        %vm1884 = vcmask 7168
        %1885 = vst.msk [vmem:[%s261] sm:$0xff] %vm1884, %v1868
        %1886 = vst.msk [vmem:[%s261 + $0x8] sm:$0xff] %vm1884, %v1869
        %1887 = vst.msk [vmem:[%s261 + $0x10] sm:$0xff] %vm1884, %v1870
        %1888 = vst.msk [vmem:[%s261 + $0x18] sm:$0xff] %vm1884, %v1871
        %1889 = vst.msk [vmem:[%s261 + $0x20] sm:$0xff] %vm1884, %v1872
        %1890 = vst.msk [vmem:[%s261 + $0x28] sm:$0xff] %vm1884, %v1873
        %1891 = vst.msk [vmem:[%s261 + $0x30] sm:$0xff] %vm1884, %v1874
        %1892 = vst.msk [vmem:[%s261 + $0x38] sm:$0xff] %vm1884, %v1875
        %1893 = vst.msk [vmem:[%s261 + $0x40] sm:$0xff] %vm1884, %v1876
        %1894 = vst.msk [vmem:[%s261 + $0x48] sm:$0xff] %vm1884, %v1877
        %1895 = vst.msk [vmem:[%s261 + $0x50] sm:$0xff] %vm1884, %v1878
        %1896 = vst.msk [vmem:[%s261 + $0x58] sm:$0xff] %vm1884, %v1879
        %1897 = vst.msk [vmem:[%s261 + $0x60] sm:$0xff] %vm1884, %v1880
        %1898 = vst.msk [vmem:[%s261 + $0x68] sm:$0xff] %vm1884, %v1881
        %1899 = vst.msk [vmem:[%s261 + $0x70] sm:$0xff] %vm1884, %v1882
        %1900 = vst.msk [vmem:[%s261 + $0x78] sm:$0xff] %vm1884, %v1883
      $region52: #{tpu_custom_call.1} parent=35 // pred_fallthru
        _
      %s1901 = smul.u32 16, %s19
      %p1902 = scmp.lt.s32.totalorder %s1901, 31
      %s1903 = scalar_select %p1902, %s1901, 31
      %s1904 = smul.addr %s1903, 8
      %s1905 = scalar_lea.vmem %s4, %s1904
      // Predicated region
      $region53: #{tpu_custom_call.1} parent=35 // pred_check
        %p1906 = pneg %p149
      $region54: #{tpu_custom_call.1} parent=35 // pred_check_branch
        %1908 = sbr.rel (%p1906) target = $region56
      $region55: #{tpu_custom_call.1} parent=35 // pred_region
        %s1909 = smul.u32 16, %s19
      $region56: #{tpu_custom_call.1} parent=35 // pred_fallthru
        _
    $region36: #{tpu_custom_call.1} parent=5 // pred_fallthru
      _
    %p1910 = scmp.le.s32.totalorder 2, %s10
    // Predicated region
    $region57: #{tpu_custom_call.1} parent=5 // pred_check
      %p1911 = pneg %p1910
    $region58: #{tpu_custom_call.1} parent=5 // pred_check_branch
      %1913 = sbr.rel (%p1911) target = $region60
    $region59: #{tpu_custom_call.1} parent=5 // pred_region
      %s1914 = ssub.s32 %s10, 2
      // Predicated region
      $region61: #{tpu_custom_call.1} parent=59 // pred_check
        %p1915 = pneg %p155
      $region62: #{tpu_custom_call.1} parent=59 // pred_check_branch
        %1917 = sbr.rel (%p1915) target = $region64
      $region63: #{tpu_custom_call.1} parent=59 // pred_region
        %s1918 = smul.u32 16, %s21
        %p1919 = scmp.lt.s32.totalorder %s1918, 31
        %s1920 = scalar_select %p1919, %s1918, 31
        %s1921 = smul.addr %s1920, 8
        %s1922 = scalar_lea.vmem %s4, %s1921
      $region64: #{tpu_custom_call.1} parent=59 // pred_fallthru
        _
    $region60: #{tpu_custom_call.1} parent=5 // pred_fallthru
      _
  $region6: #{tpu_custom_call.1} parent=0 // loop_footer
    %s14 = sadd.s32 1, %s10
  $region7: #{tpu_custom_call.1} parent=0 // loop_footer_branch
    %9 = sbr.rel target = $region3
  $region8: #{tpu_custom_call.1} parent=0 // loop_exit
    _

</llo_original>
